<compile_context>
chip_gen: v5e
topology: v5e:2x2
jax: 0.10.0
libtpu: 0.0.40
codegen_flags: <defaults>
</compile_context>

<pallas_src>
import jax
import jax.numpy as jnp
from jax.experimental import pallas as pl
from jax.experimental.pallas import tpu as pltpu


INT_BITS = 4                                   # integer bits (incl. sign)
FRAC_BITS = 8                                  # fractional bits
_SCALE = 2.0 ** FRAC_BITS
_INV_SCALE = 1.0 / _SCALE                      # exact for power-of-two scale
_QMAX = 2.0 ** (INT_BITS + FRAC_BITS - 1) - 1.0   # 2047
_QMIN = -(2.0 ** (INT_BITS + FRAC_BITS - 1))      # -2048


def _quantize(x):
    """Quantize(x, 4, 8): clip(round(x*2^8), -2^11, 2^11-1) / 2^8."""
    return jnp.clip(jnp.round(x * _SCALE), _QMIN, _QMAX) * _INV_SCALE


def _make_fused_kernel(n_layers):
    """quantize input -> [matmul -> quantize(+relu)] * n_layers -> store.

    Activations are kept in the fixed-point CODE domain (integer codes held
    in f32) between layers; weights stay in the real (already quantized)
    domain, so  code_out = clip(round(code_in @ W_q), lo, qmax).
    ReLU is folded into the hidden-layer clip (lower bound 0)."""

    def kernel(*refs):
        x_ref = refs[0]
        w_refs = refs[1:1 + n_layers]
        o_ref = refs[1 + n_layers]

        # Input -> code domain (also subsumes the module's extra
        # Quantize(inputs): quantization is idempotent).
        code = jnp.clip(jnp.round(x_ref[...].astype(jnp.float32) * _SCALE),
                        _QMIN, _QMAX)
        for i in range(n_layers):
            acc = jnp.dot(code, w_refs[i][...],
                          preferred_element_type=jnp.float32,
                          precision=jax.lax.Precision.HIGHEST)
            lo = 0.0 if i < n_layers - 1 else _QMIN    # ReLU folded into clip
            code = jnp.clip(jnp.round(acc), lo, _QMAX)
        # Leave the code domain exactly once, at the final store.
        o_ref[...] = (code * _INV_SCALE).astype(o_ref.dtype)

    return kernel


def prepare_qmlp_weights(weights):
    """One-time prep: Quantize (matches load_states; idempotent) and transpose
    to (Din, Dout).  No lane padding of the last layer -> true-width output."""
    return [jnp.transpose(_quantize(w.astype(jnp.float32))) for w in weights]


def _pick_batch_tile(B):
    """512..2048-row tile (multiple of 8); >=8 grid steps at large B and
    always >=2 steps when possible (v7x: feed both TensorCores, keep DMA
    pipelining)."""
    tb = max(512, min(2048, B // 8))
    tb = min(tb, B)
    if B > 8:
        tb = min(tb, (B + 1) // 2)     # guarantee at least 2 grid steps
    return max(8, (tb // 8) * 8)


def qmlp_forward(x, weights_t, block_batch=None):
    """QMLP.forward as a single fused Pallas call.

    x:         (B, Din) float32
    weights_t: output of prepare_qmlp_weights (pre-quantized, pre-transposed)
    """
    B, d_in = x.shape
    n_layers = len(weights_t)
    d_out = weights_t[-1].shape[1]

    if block_batch is None:
        tb = _pick_batch_tile(B)
    else:
        tb = max(8, (min(block_batch, B) // 8) * 8)

    n_steps = -(-B // tb)              # ceil
    b_pad = n_steps * tb
    x_p = x if b_pad == B else jnp.pad(x, ((0, b_pad - B), (0, 0)))

    in_specs = [pl.BlockSpec((tb, d_in), lambda i: (i, 0))]
    for w in weights_t:
        # Constant index_map -> weight is fetched once and stays VMEM-resident
        # across the whole batch grid.
        in_specs.append(pl.BlockSpec(w.shape, lambda i: (0, 0)))

    out = pl.pallas_call(
        _make_fused_kernel(n_layers),
        out_shape=jax.ShapeDtypeStruct((b_pad, d_out), jnp.float32),
        grid=(n_steps,),
        in_specs=in_specs,
        out_specs=pl.BlockSpec((tb, d_out), lambda i: (i, 0)),
        compiler_params=pltpu.CompilerParams(
            dimension_semantics=("parallel",)),   # v7x: batch split across TCs
    )(x_p, *weights_t)

    return out[:B]


def init_qmlp_weights(key, n_input_dims, n_output_dims, n_neurons, n_hidden_layers):
    """Deterministic init matching the module's layer shapes (bias=False).

    Mirrors torch.nn.Linear's U(-1/sqrt(fan_in), 1/sqrt(fan_in)) init, then
    applies Quantize(w, 4, 8) as load_states() would.  Returned weights are in
    the module's native (out, in) layout."""
    dims = ([(n_neurons, n_input_dims)] +
            [(n_neurons, n_neurons) for _ in range(n_hidden_layers - 1)] +
            [(n_output_dims, n_neurons)])
    keys = jax.random.split(key, len(dims))
    weights = []
    for k, (dout, din) in zip(keys, dims):
        bound = 1.0 / jnp.sqrt(float(din))
        w = jax.random.uniform(k, (dout, din), jnp.float32, -bound, bound)
        weights.append(_quantize(w))
    return weights


if __name__ == "__main__":
    # Pointwise quantized MLP on a batch of feature vectors.
    batch = 256
    n_input_dims = 16
    n_output_dims = 4
    network_config = {"n_neurons": 64, "n_hidden_layers": 2}

    key = jax.random.PRNGKey(0)
    kx, kw = jax.random.split(key)
    x = jax.random.normal(kx, (batch, n_input_dims), jnp.float32)

    weights = init_qmlp_weights(
        kw, n_input_dims, n_output_dims,
        network_config["n_neurons"], network_config["n_hidden_layers"])

    weights_t = prepare_qmlp_weights(weights)   # one-time: quantize + transpose

    out = qmlp_forward(x, weights_t)
    out = jax.block_until_ready(out)

    # Pure-JAX reference of the module's forward (same matmul precision).
    def ref_forward(x, weights):
        x = _quantize(x)
        for i, w in enumerate(weights):
            h = jnp.dot(_quantize(x), _quantize(w).T,
                        preferred_element_type=jnp.float32,
                        precision=jax.lax.Precision.HIGHEST)
            x = _quantize(h)
            if i < len(weights) - 1:
                x = jnp.maximum(x, 0.0)
        return x

    ref = ref_forward(x, weights)
    assert out.shape == (batch, n_output_dims)
    assert jnp.allclose(out, ref, atol=1e-5, rtol=1e-5)
    print("KERNEL_OK")
</pallas_src>

<mosaic_0001>
module attributes {stable_mosaic.version = 11 : i64} {
  func.func @kernel(%arg0: i32, %arg1: memref<128x16xf32, #tpu.memory_space<vmem>>, %arg2: memref<16x64xf32, #tpu.memory_space<vmem>>, %arg3: memref<64x64xf32, #tpu.memory_space<vmem>>, %arg4: memref<64x4xf32, #tpu.memory_space<vmem>>, %arg5: memref<128x4xf32, #tpu.memory_space<vmem>>) attributes {dimension_semantics = [#tpu.dimension_semantics<parallel>], iteration_bounds = array<i64: 2>, scalar_prefetch = 0 : i64, scratch_operands = 0 : i64, tpu.core_type = #tpu.core_type<tc>, window_params = [{transform_indices = @transform_0, window_bounds = array<i64: 128, 16>}, {pipeline_mode = #tpu.pipeline_mode<synchronous>, transform_indices = @transform_1, window_bounds = array<i64: 16, 64>}, {pipeline_mode = #tpu.pipeline_mode<synchronous>, transform_indices = @transform_2, window_bounds = array<i64: 64, 64>}, {pipeline_mode = #tpu.pipeline_mode<synchronous>, transform_indices = @transform_3, window_bounds = array<i64: 64, 4>}, {transform_indices = @transform_4, window_bounds = array<i64: 128, 4>}]} {
    %c0 = arith.constant 0 : index
    %c0_0 = arith.constant 0 : index
    %0 = vector.load %arg1[%c0, %c0_0] : memref<128x16xf32, #tpu.memory_space<vmem>>, vector<128x16xf32>
    %cst = arith.constant 2.560000e+02 : f32
    %1 = vector.broadcast %cst : f32 to vector<128x16xf32>
    %2 = arith.mulf %0, %1 : vector<128x16xf32>
    %3 = math.roundeven %2 : vector<128x16xf32>
    %cst_1 = arith.constant -2.048000e+03 : f32
    %cst_2 = arith.constant 2.047000e+03 : f32
    %4 = vector.broadcast %cst_1 : f32 to vector<128x16xf32>
    %5 = arith.maximumf %4, %3 : vector<128x16xf32>
    %6 = vector.broadcast %cst_2 : f32 to vector<128x16xf32>
    %7 = arith.minimumf %6, %5 : vector<128x16xf32>
    %c0_3 = arith.constant 0 : index
    %c0_4 = arith.constant 0 : index
    %8 = vector.load %arg2[%c0_3, %c0_4] : memref<16x64xf32, #tpu.memory_space<vmem>>, vector<16x64xf32>
    %cst_5 = arith.constant dense<0.000000e+00> : vector<128x64xf32>
    %9 = tpu.matmul %7, %8, %cst_5 {dimension_numbers = #tpu.dot_dimension_numbers<[1], [0], [0], [1], [0, 0, 1, 1], [], []>, precision = #tpu.contract_precision<fp32>} : vector<128x16xf32>, vector<16x64xf32>, vector<128x64xf32> -> vector<128x64xf32>
    %10 = math.roundeven %9 : vector<128x64xf32>
    %cst_6 = arith.constant 0.000000e+00 : f32
    %cst_7 = arith.constant 2.047000e+03 : f32
    %11 = vector.broadcast %cst_6 : f32 to vector<128x64xf32>
    %12 = arith.maximumf %11, %10 : vector<128x64xf32>
    %13 = vector.broadcast %cst_7 : f32 to vector<128x64xf32>
    %14 = arith.minimumf %13, %12 : vector<128x64xf32>
    %c0_8 = arith.constant 0 : index
    %c0_9 = arith.constant 0 : index
    %15 = vector.load %arg3[%c0_8, %c0_9] : memref<64x64xf32, #tpu.memory_space<vmem>>, vector<64x64xf32>
    %cst_10 = arith.constant dense<0.000000e+00> : vector<128x64xf32>
    %16 = tpu.matmul %14, %15, %cst_10 {dimension_numbers = #tpu.dot_dimension_numbers<[1], [0], [0], [1], [0, 0, 1, 1], [], []>, precision = #tpu.contract_precision<fp32>} : vector<128x64xf32>, vector<64x64xf32>, vector<128x64xf32> -> vector<128x64xf32>
    %17 = math.roundeven %16 : vector<128x64xf32>
    %cst_11 = arith.constant 0.000000e+00 : f32
    %cst_12 = arith.constant 2.047000e+03 : f32
    %18 = vector.broadcast %cst_11 : f32 to vector<128x64xf32>
    %19 = arith.maximumf %18, %17 : vector<128x64xf32>
    %20 = vector.broadcast %cst_12 : f32 to vector<128x64xf32>
    %21 = arith.minimumf %20, %19 : vector<128x64xf32>
    %c0_13 = arith.constant 0 : index
    %c0_14 = arith.constant 0 : index
    %22 = vector.load %arg4[%c0_13, %c0_14] : memref<64x4xf32, #tpu.memory_space<vmem>>, vector<64x4xf32>
    %cst_15 = arith.constant dense<0.000000e+00> : vector<128x4xf32>
    %23 = tpu.matmul %21, %22, %cst_15 {dimension_numbers = #tpu.dot_dimension_numbers<[1], [0], [0], [1], [0, 0, 1, 1], [], []>, precision = #tpu.contract_precision<fp32>} : vector<128x64xf32>, vector<64x4xf32>, vector<128x4xf32> -> vector<128x4xf32>
    %24 = math.roundeven %23 : vector<128x4xf32>
    %cst_16 = arith.constant -2.048000e+03 : f32
    %cst_17 = arith.constant 2.047000e+03 : f32
    %25 = vector.broadcast %cst_16 : f32 to vector<128x4xf32>
    %26 = arith.maximumf %25, %24 : vector<128x4xf32>
    %27 = vector.broadcast %cst_17 : f32 to vector<128x4xf32>
    %28 = arith.minimumf %27, %26 : vector<128x4xf32>
    %cst_18 = arith.constant 3.906250e-03 : f32
    %29 = vector.broadcast %cst_18 : f32 to vector<128x4xf32>
    %30 = arith.mulf %28, %29 : vector<128x4xf32>
    %c0_19 = arith.constant 0 : index
    %c0_20 = arith.constant 0 : index
    %31 = vector.load %arg5[%c0_19, %c0_20] : memref<128x4xf32, #tpu.memory_space<vmem>>, vector<128x4xf32>
    tpu.vector_store %arg5[%c0_19, %c0_20], %30 {strides = array<i32>} : memref<128x4xf32, #tpu.memory_space<vmem>>, vector<128x4xf32>,
    return
  }
  func.func @transform_0(%arg0: i32) -> (i32, i32) {
    %c0_i32 = arith.constant 0 : i32
    %c0_i32_0 = arith.constant 0 : i32
    return %arg0, %c0_i32 : i32, i32
  }
  func.func @transform_1(%arg0: i32) -> (i32, i32) {
    %c0_i32 = arith.constant 0 : i32
    %c0_i32_0 = arith.constant 0 : i32
    %c0_i32_1 = arith.constant 0 : i32
    return %c0_i32, %c0_i32_0 : i32, i32
  }
  func.func @transform_2(%arg0: i32) -> (i32, i32) {
    %c0_i32 = arith.constant 0 : i32
    %c0_i32_0 = arith.constant 0 : i32
    %c0_i32_1 = arith.constant 0 : i32
    return %c0_i32, %c0_i32_0 : i32, i32
  }
  func.func @transform_3(%arg0: i32) -> (i32, i32) {
    %c0_i32 = arith.constant 0 : i32
    %c0_i32_0 = arith.constant 0 : i32
    %c0_i32_1 = arith.constant 0 : i32
    return %c0_i32, %c0_i32_0 : i32, i32
  }
  func.func @transform_4(%arg0: i32) -> (i32, i32) {
    %c0_i32 = arith.constant 0 : i32
    %c0_i32_0 = arith.constant 0 : i32
    return %arg0, %c0_i32 : i32, i32
  }
}

</mosaic_0001>

<llo_original>
// kernel: tpu_custom_call.1
$region0: #{tpu_custom_call.1}
  #allocation0 [shape = 'u32[]', space=smem, size = 0x4, offset = 0x4, fixed_abs, tag = 'smem constant byte address 0x4 - core index']
  #allocation1 [shape = 'u32[72,128]{1,0:T(1,128)}', space=vmem, size = 0x9000, scoped, tag = 'internal scratch']
  %s0 = inlined_call_operand.vmem [shape: f32[256,16], index: 0, kind: input, shape index: {}]
  %s1 = inlined_call_operand.vmem [shape: f32[16,64], index: 1, kind: input, shape index: {}]
  %s2 = inlined_call_operand.vmem [shape: f32[64,64], index: 2, kind: input, shape index: {}]
  %s3 = inlined_call_operand.vmem [shape: f32[64,4], index: 3, kind: input, shape index: {}]
  %s4 = inlined_call_operand.vmem [shape: f32[256,4], index: 4, kind: output, shape index: {}]
  %s5 = sld [smem:[#allocation0]]
  $region49: #{tpu_custom_call.1} parent=0
    _
  %s7 = ssub.s32 1, %s5
  %s8 = scalar_select 0, %s7, %s5
  loop: start=0, step=1, limit=4
  $region2: #{tpu_custom_call.1} parent=0 // loop_pre_header
    _
  $region3: #{tpu_custom_call.1} parent=0 // loop_header
    %s10 = sphi 0, %s14
    %p11 = scmp.ge.s32.totalorder %s10, 4
    %s20 = sphi 0, %s22
    %s23 = sphi 0, %s20
    %s24 = sphi 0, %s23
    %s40 = sphi 0, %s24
    %s44 = sphi 0, %s44
    %s46 = sphi 0, %s44
    %s47 = sphi 0, %s46
    %s61 = sphi 0, %s47
    %s65 = sphi 0, %s65
    %s67 = sphi 0, %s65
    %s68 = sphi 0, %s67
    %s82 = sphi 0, %s68
    %s86 = sphi 0, %s86
    %s88 = sphi 0, %s86
    %s89 = sphi 0, %s88
    %s103 = sphi 0, %s89
    %s109 = sphi 0, %s111
    %s112 = sphi 0, %s109
    %s113 = sphi 0, %s112
    %s129 = sphi 0, %s113
  $region4: #{tpu_custom_call.1} parent=0 // loop_header_branch
    %13 = sbr.rel (%p11) target = $region8
  $region5: #{tpu_custom_call.1} parent=0 // loop_body
    %s15 = ssub.s32 %s10, 1
    %s16 = ssub.s32 %s10, 2
    %s17 = sadd.s32 %s10, 1
    %s18 = ssub.s32 %s10, %s17
    %p19 = scmp.eq.s32.totalorder %s18, 0
    %s21 = sadd.s32 %s20, 1
    %s22 = scalar_select %p19, %s20, %s21
    %p25 = pneg %p19
    %p26 = scmp.eq.s32.totalorder %s10, 1
    %p27 = por %p25, %p26
    %p28 = scmp.ne.s32.totalorder %s20, %s23
    %p29 = scmp.eq.s32.totalorder %s10, 0
    %p30 = por %p28, %p29
    %p31 = scmp.ne.s32.totalorder %s20, %s23
    %p32 = scmp.eq.s32.totalorder %s15, 1
    %p33 = por %p31, %p32
    %p34 = scmp.ne.s32.totalorder %s23, %s24
    %p35 = scmp.eq.s32.totalorder %s15, 0
    %p36 = por %p34, %p35
    %p37 = scmp.ne.s32.totalorder %s23, %s24
    %p38 = scmp.eq.s32.totalorder %s16, 1
    %p39 = por %p37, %p38
    %p41 = scmp.ne.s32.totalorder %s24, %s40
    %p42 = scmp.eq.s32.totalorder %s16, 0
    %p43 = por %p41, %p42
    %s45 = sadd.s32 %s44, 1
    %p48 = scmp.eq.s32.totalorder %s10, 1
    %p49 = scmp.ne.s32.totalorder %s44, %s46
    %p50 = scmp.eq.s32.totalorder %s10, 0
    %p51 = por %p49, %p50
    %p52 = scmp.ne.s32.totalorder %s44, %s46
    %p53 = scmp.eq.s32.totalorder %s15, 1
    %p54 = por %p52, %p53
    %p55 = scmp.ne.s32.totalorder %s46, %s47
    %p56 = scmp.eq.s32.totalorder %s15, 0
    %p57 = por %p55, %p56
    %p58 = scmp.ne.s32.totalorder %s46, %s47
    %p59 = scmp.eq.s32.totalorder %s16, 1
    %p60 = por %p58, %p59
    %p62 = scmp.ne.s32.totalorder %s47, %s61
    %p63 = scmp.eq.s32.totalorder %s16, 0
    %p64 = por %p62, %p63
    %s66 = sadd.s32 %s65, 1
    %p69 = scmp.eq.s32.totalorder %s10, 1
    %p70 = scmp.ne.s32.totalorder %s65, %s67
    %p71 = scmp.eq.s32.totalorder %s10, 0
    %p72 = por %p70, %p71
    %p73 = scmp.ne.s32.totalorder %s65, %s67
    %p74 = scmp.eq.s32.totalorder %s15, 1
    %p75 = por %p73, %p74
    %p76 = scmp.ne.s32.totalorder %s67, %s68
    %p77 = scmp.eq.s32.totalorder %s15, 0
    %p78 = por %p76, %p77
    %p79 = scmp.ne.s32.totalorder %s67, %s68
    %p80 = scmp.eq.s32.totalorder %s16, 1
    %p81 = por %p79, %p80
    %p83 = scmp.ne.s32.totalorder %s68, %s82
    %p84 = scmp.eq.s32.totalorder %s16, 0
    %p85 = por %p83, %p84
    %s87 = sadd.s32 %s86, 1
    %p90 = scmp.eq.s32.totalorder %s10, 1
    %p91 = scmp.ne.s32.totalorder %s86, %s88
    %p92 = scmp.eq.s32.totalorder %s10, 0
    %p93 = por %p91, %p92
    %p94 = scmp.ne.s32.totalorder %s86, %s88
    %p95 = scmp.eq.s32.totalorder %s15, 1
    %p96 = por %p94, %p95
    %p97 = scmp.ne.s32.totalorder %s88, %s89
    %p98 = scmp.eq.s32.totalorder %s15, 0
    %p99 = por %p97, %p98
    %p100 = scmp.ne.s32.totalorder %s88, %s89
    %p101 = scmp.eq.s32.totalorder %s16, 1
    %p102 = por %p100, %p101
    %p104 = scmp.ne.s32.totalorder %s89, %s103
    %p105 = scmp.eq.s32.totalorder %s16, 0
    %p106 = por %p104, %p105
    %s107 = ssub.s32 %s10, %s17
    %p108 = scmp.eq.s32.totalorder %s107, 0
    %s110 = sadd.s32 %s109, 1
    %s111 = scalar_select %p108, %s109, %s110
    %p114 = pneg %p108
    %p115 = scmp.eq.s32.totalorder %s10, 1
    %p116 = por %p114, %p115
    %p117 = scmp.ne.s32.totalorder %s109, %s112
    %p118 = scmp.eq.s32.totalorder %s10, 0
    %p119 = por %p117, %p118
    %p120 = scmp.ne.s32.totalorder %s109, %s112
    %p121 = scmp.eq.s32.totalorder %s15, 1
    %p122 = por %p120, %p121
    %p123 = scmp.ne.s32.totalorder %s112, %s113
    %p124 = scmp.eq.s32.totalorder %s15, 0
    %p125 = por %p123, %p124
    %p126 = scmp.ne.s32.totalorder %s112, %s113
    %p127 = scmp.eq.s32.totalorder %s16, 1
    %p128 = por %p126, %p127
    %p130 = scmp.ne.s32.totalorder %s113, %s129
    %p131 = scmp.eq.s32.totalorder %s16, 0
    %p132 = por %p130, %p131
    %p133 = scmp.le.s32.totalorder 1, %s10
    %p134 = scmp.lt.s32.totalorder %s10, 3
    %p135 = pnand %p133, %p134
    %p136 = pneg %p135
    // Predicated region
    $region9: #{tpu_custom_call.1} parent=5 // pred_check
      _
    $region10: #{tpu_custom_call.1} parent=5 // pred_check_branch
      %138 = sbr.rel (%p135) target = $region12
    $region11: #{tpu_custom_call.1} parent=5 // pred_region
      %s139 = ssub.s32 %s10, 1
      // Predicated region
      $region13: #{tpu_custom_call.1} parent=11 // pred_check
        %p140 = pneg %p57
      $region14: #{tpu_custom_call.1} parent=11 // pred_check_branch
        %142 = sbr.rel (%p140) target = $region16
      $region15: #{tpu_custom_call.1} parent=11 // pred_region
        _
      $region16: #{tpu_custom_call.1} parent=11 // pred_fallthru
        _
      // Predicated region
      $region17: #{tpu_custom_call.1} parent=11 // pred_check
        %p143 = pneg %p78
      $region18: #{tpu_custom_call.1} parent=11 // pred_check_branch
        %145 = sbr.rel (%p143) target = $region20
      $region19: #{tpu_custom_call.1} parent=11 // pred_region
        _
      $region20: #{tpu_custom_call.1} parent=11 // pred_fallthru
        _
      // Predicated region
      $region21: #{tpu_custom_call.1} parent=11 // pred_check
        %p146 = pneg %p99
      $region22: #{tpu_custom_call.1} parent=11 // pred_check_branch
        %148 = sbr.rel (%p146) target = $region24
      $region23: #{tpu_custom_call.1} parent=11 // pred_region
        _
      $region24: #{tpu_custom_call.1} parent=11 // pred_fallthru
        _
    $region12: #{tpu_custom_call.1} parent=5 // pred_fallthru
      _
    %p149 = scmp.lt.s32.totalorder %s10, 2
    // Predicated region
    $region25: #{tpu_custom_call.1} parent=5 // pred_check
      %p150 = pneg %p149
    $region26: #{tpu_custom_call.1} parent=5 // pred_check_branch
      %152 = sbr.rel (%p150) target = $region28
    $region27: #{tpu_custom_call.1} parent=5 // pred_region
      // Predicated region
      $region29: #{tpu_custom_call.1} parent=27 // pred_check
        %p153 = pneg %p30
      $region30: #{tpu_custom_call.1} parent=27 // pred_check_branch
        %155 = sbr.rel (%p153) target = $region32
      $region31: #{tpu_custom_call.1} parent=27 // pred_region
        %s156 = smul.u32 16, %s10
        %p157 = scmp.lt.s32.totalorder %s156, 31
        %s158 = scalar_select %p157, %s156, 31
        %s159 = smul.addr %s158, 8
        %s160 = scalar_lea.vmem %s0, %s159
        %s161 = smul.u32 16, %s10
      $region32: #{tpu_custom_call.1} parent=27 // pred_fallthru
        _
    $region28: #{tpu_custom_call.1} parent=5 // pred_fallthru
      _
    %p162 = scmp.le.s32.totalorder 1, %s10
    %p163 = scmp.lt.s32.totalorder %s10, 3
    %p164 = pnand %p162, %p163
    %p165 = pneg %p164
    // Predicated region
    $region33: #{tpu_custom_call.1} parent=5 // pred_check
      _
    $region34: #{tpu_custom_call.1} parent=5 // pred_check_branch
      %167 = sbr.rel (%p164) target = $region36
    $region35: #{tpu_custom_call.1} parent=5 // pred_region
      %s168 = ssub.s32 %s10, 1
      %s169 = smul.u32 16, %s15
      %p170 = scmp.lt.s32.totalorder %s169, 31
      %s171 = scalar_select %p170, %s169, 31
      %s172 = smul.addr %s171, 8
      %s173 = scalar_lea.vmem %s0, %s172
      %p174 = pneg %p36
      %p175 = pneg %p33
      %p176 = pneg %p57
      %p177 = pneg %p54
      %p178 = pneg %p78
      %p179 = pneg %p75
      %p180 = pneg %p99
      %p181 = pneg %p96
      %p182 = pneg %p125
      %p183 = pneg %p122
      %s184 = smul.u32 16, %s15
      %p185 = scmp.lt.s32.totalorder %s184, 31
      %s186 = scalar_select %p185, %s184, 31
      %s187 = smul.addr %s186, 8
      %s188 = scalar_lea.vmem %s4, %s187
      %s189 = smul.u32 16, %s15
      %p190 = scmp.lt.s32.totalorder %s189, 31
      %s191 = scalar_select %p190, %s189, 31
      %s192 = smul.addr %s191, 8
      %s193 = scalar_lea.vmem %s0, %s192
      %s194 = smul.u32 16, %s15
      %s195 = smul.u32 16, %s15
      %p196 = scmp.lt.s32.totalorder %s195, 31
      %s197 = scalar_select %p196, %s195, 31
      %s198 = smul.addr %s197, 8
      %s199 = scalar_lea.vmem %s4, %s198
      %s200 = smul.u32 16, %s15
      %v201 = vld [vmem:[%s193] sm:$0xff]
      %v202 = vld [vmem:[%s193 + $0x8] sm:$0xff]
      %v203 = vld [vmem:[%s193 + $0x10] sm:$0xff]
      %v204 = vld [vmem:[%s193 + $0x18] sm:$0xff]
      %v205 = vld [vmem:[%s193 + $0x20] sm:$0xff]
      %v206 = vld [vmem:[%s193 + $0x28] sm:$0xff]
      %v207 = vld [vmem:[%s193 + $0x30] sm:$0xff]
      %v208 = vld [vmem:[%s193 + $0x38] sm:$0xff]
      %v209 = vld [vmem:[%s193 + $0x40] sm:$0xff]
      %v210 = vld [vmem:[%s193 + $0x48] sm:$0xff]
      %v211 = vld [vmem:[%s193 + $0x50] sm:$0xff]
      %v212 = vld [vmem:[%s193 + $0x58] sm:$0xff]
      %v213 = vld [vmem:[%s193 + $0x60] sm:$0xff]
      %v214 = vld [vmem:[%s193 + $0x68] sm:$0xff]
      %v215 = vld [vmem:[%s193 + $0x70] sm:$0xff]
      %v216 = vld [vmem:[%s193 + $0x78] sm:$0xff]
      %v217 = vmul.f32 %v201, 256.0
      %v218 = vmul.f32 %v202, 256.0
      %v219 = vmul.f32 %v203, 256.0
      %v220 = vmul.f32 %v204, 256.0
      %v221 = vmul.f32 %v205, 256.0
      %v222 = vmul.f32 %v206, 256.0
      %v223 = vmul.f32 %v207, 256.0
      %v224 = vmul.f32 %v208, 256.0
      %v225 = vmul.f32 %v209, 256.0
      %v226 = vmul.f32 %v210, 256.0
      %v227 = vmul.f32 %v211, 256.0
      %v228 = vmul.f32 %v212, 256.0
      %v229 = vmul.f32 %v213, 256.0
      %v230 = vmul.f32 %v214, 256.0
      %v231 = vmul.f32 %v215, 256.0
      %v232 = vmul.f32 %v216, 256.0
      %v233 = vround.ne.pseudo %v217
      %v234 = vround.ne.pseudo %v218
      %v235 = vround.ne.pseudo %v219
      %v236 = vround.ne.pseudo %v220
      %v237 = vround.ne.pseudo %v221
      %v238 = vround.ne.pseudo %v222
      %v239 = vround.ne.pseudo %v223
      %v240 = vround.ne.pseudo %v224
      %v241 = vround.ne.pseudo %v225
      %v242 = vround.ne.pseudo %v226
      %v243 = vround.ne.pseudo %v227
      %v244 = vround.ne.pseudo %v228
      %v245 = vround.ne.pseudo %v229
      %v246 = vround.ne.pseudo %v230
      %v247 = vround.ne.pseudo %v231
      %v248 = vround.ne.pseudo %v232
      %v249 = vmax.f32 %v233, -2048.0
      %v250 = vmax.f32 %v234, -2048.0
      %v251 = vmax.f32 %v235, -2048.0
      %v252 = vmax.f32 %v236, -2048.0
      %v253 = vmax.f32 %v237, -2048.0
      %v254 = vmax.f32 %v238, -2048.0
      %v255 = vmax.f32 %v239, -2048.0
      %v256 = vmax.f32 %v240, -2048.0
      %v257 = vmax.f32 %v241, -2048.0
      %v258 = vmax.f32 %v242, -2048.0
      %v259 = vmax.f32 %v243, -2048.0
      %v260 = vmax.f32 %v244, -2048.0
      %v261 = vmax.f32 %v245, -2048.0
      %v262 = vmax.f32 %v246, -2048.0
      %v263 = vmax.f32 %v247, -2048.0
      %v264 = vmax.f32 %v248, -2048.0
      %v265 = vmin.f32 %v249, 2047.0
      %v266 = vmin.f32 %v250, 2047.0
      %v267 = vmin.f32 %v251, 2047.0
      %v268 = vmin.f32 %v252, 2047.0
      %v269 = vmin.f32 %v253, 2047.0
      %v270 = vmin.f32 %v254, 2047.0
      %v271 = vmin.f32 %v255, 2047.0
      %v272 = vmin.f32 %v256, 2047.0
      %v273 = vmin.f32 %v257, 2047.0
      %v274 = vmin.f32 %v258, 2047.0
      %v275 = vmin.f32 %v259, 2047.0
      %v276 = vmin.f32 %v260, 2047.0
      %v277 = vmin.f32 %v261, 2047.0
      %v278 = vmin.f32 %v262, 2047.0
      %v279 = vmin.f32 %v263, 2047.0
      %v280 = vmin.f32 %v264, 2047.0
      %v281 = vld [vmem:[%s1] sm:$0xff]
      %v282 = vld [vmem:[%s1 + $0x8] sm:$0xff]
      %vm283 = vcmask 130048
      %v285 = vsel %vm283, %v265, 0
      %v288 = vsel %vm283, %v266, 0
      %v291 = vsel %vm283, %v267, 0
      %v294 = vsel %vm283, %v268, 0
      %v297 = vsel %vm283, %v269, 0
      %v300 = vsel %vm283, %v270, 0
      %v303 = vsel %vm283, %v271, 0
      %v306 = vsel %vm283, %v272, 0
      %v309 = vsel %vm283, %v273, 0
      %v312 = vsel %vm283, %v274, 0
      %v315 = vsel %vm283, %v275, 0
      %v318 = vsel %vm283, %v276, 0
      %v321 = vsel %vm283, %v277, 0
      %v324 = vsel %vm283, %v278, 0
      %v327 = vsel %vm283, %v279, 0
      %v330 = vsel %vm283, %v280, 0
      %332 = vmatpush.msra.mxu0 0.0
      %333 = vmatpush.msra.mxu0 0.0
      %334 = vmatpush.msra.mxu0 0.0
      %335 = vmatpush.msra.mxu0 0.0
      %336 = vmatpush.msra.mxu0 0.0
      %337 = vmatpush.msra.mxu0 0.0
      %338 = vmatpush.msra.mxu0 0.0
      %339 = vmatpush.msra.mxu0 0.0
      %340 = vmatpush.msra.mxu0 0.0
      %341 = vmatpush.msra.mxu0 0.0
      %342 = vmatpush.msra.mxu0 0.0
      %343 = vmatpush.msra.mxu0 0.0
      %344 = vmatpush.msra.mxu0 0.0
      %345 = vmatpush.msra.mxu0 0.0
      %v346 = vand.u32 %v282, 4294901760
      %347 = vmatpush.msra.mxu0 %v346
      %v348 = vand.u32 %v281, 4294901760
      %349 = vmatpush.msra.mxu0 %v348
      %v350 = vand.u32 %v285, 4294901760
      %v351 = vsub.f32 %v285, %v350
      %v352 = vand.u32 %v351, 4294901760
      %v353 = vsub.f32 %v351, %v352
      %v354 = vand.u32 %v353, 4294901760
      %355 = vmatmul.f32.gmra.mxu0 %v354
      %v356 = vpop.f32.mrf.mxu0
      %v357 = vadd.f32 0.0, %v356
      %v358 = vand.u32 %v288, 4294901760
      %v359 = vsub.f32 %v288, %v358
      %v360 = vand.u32 %v359, 4294901760
      %v361 = vsub.f32 %v359, %v360
      %v362 = vand.u32 %v361, 4294901760
      %363 = vmatmul.f32.gmra.mxu0 %v362
      %v364 = vpop.f32.mrf.mxu0
      %v365 = vadd.f32 0.0, %v364
      %v366 = vand.u32 %v291, 4294901760
      %v367 = vsub.f32 %v291, %v366
      %v368 = vand.u32 %v367, 4294901760
      %v369 = vsub.f32 %v367, %v368
      %v370 = vand.u32 %v369, 4294901760
      %371 = vmatmul.f32.gmra.mxu0 %v370
      %v372 = vpop.f32.mrf.mxu0
      %v373 = vadd.f32 0.0, %v372
      %v374 = vand.u32 %v294, 4294901760
      %v375 = vsub.f32 %v294, %v374
      %v376 = vand.u32 %v375, 4294901760
      %v377 = vsub.f32 %v375, %v376
      %v378 = vand.u32 %v377, 4294901760
      %379 = vmatmul.f32.gmra.mxu0 %v378
      %v380 = vpop.f32.mrf.mxu0
      %v381 = vadd.f32 0.0, %v380
      %v382 = vand.u32 %v297, 4294901760
      %v383 = vsub.f32 %v297, %v382
      %v384 = vand.u32 %v383, 4294901760
      %v385 = vsub.f32 %v383, %v384
      %v386 = vand.u32 %v385, 4294901760
      %387 = vmatmul.f32.gmra.mxu0 %v386
      %v388 = vpop.f32.mrf.mxu0
      %v389 = vadd.f32 0.0, %v388
      %v390 = vand.u32 %v300, 4294901760
      %v391 = vsub.f32 %v300, %v390
      %v392 = vand.u32 %v391, 4294901760
      %v393 = vsub.f32 %v391, %v392
      %v394 = vand.u32 %v393, 4294901760
      %395 = vmatmul.f32.gmra.mxu0 %v394
      %v396 = vpop.f32.mrf.mxu0
      %v397 = vadd.f32 0.0, %v396
      %v398 = vand.u32 %v303, 4294901760
      %v399 = vsub.f32 %v303, %v398
      %v400 = vand.u32 %v399, 4294901760
      %v401 = vsub.f32 %v399, %v400
      %v402 = vand.u32 %v401, 4294901760
      %403 = vmatmul.f32.gmra.mxu0 %v402
      %v404 = vpop.f32.mrf.mxu0
      %v405 = vadd.f32 0.0, %v404
      %v406 = vand.u32 %v306, 4294901760
      %v407 = vsub.f32 %v306, %v406
      %v408 = vand.u32 %v407, 4294901760
      %v409 = vsub.f32 %v407, %v408
      %v410 = vand.u32 %v409, 4294901760
      %411 = vmatmul.f32.gmra.mxu0 %v410
      %v412 = vpop.f32.mrf.mxu0
      %v413 = vadd.f32 0.0, %v412
      %v414 = vand.u32 %v309, 4294901760
      %v415 = vsub.f32 %v309, %v414
      %v416 = vand.u32 %v415, 4294901760
      %v417 = vsub.f32 %v415, %v416
      %v418 = vand.u32 %v417, 4294901760
      %419 = vmatmul.f32.gmra.mxu0 %v418
      %v420 = vpop.f32.mrf.mxu0
      %v421 = vadd.f32 0.0, %v420
      %v422 = vand.u32 %v312, 4294901760
      %v423 = vsub.f32 %v312, %v422
      %v424 = vand.u32 %v423, 4294901760
      %v425 = vsub.f32 %v423, %v424
      %v426 = vand.u32 %v425, 4294901760
      %427 = vmatmul.f32.gmra.mxu0 %v426
      %v428 = vpop.f32.mrf.mxu0
      %v429 = vadd.f32 0.0, %v428
      %v430 = vand.u32 %v315, 4294901760
      %v431 = vsub.f32 %v315, %v430
      %v432 = vand.u32 %v431, 4294901760
      %v433 = vsub.f32 %v431, %v432
      %v434 = vand.u32 %v433, 4294901760
      %435 = vmatmul.f32.gmra.mxu0 %v434
      %v436 = vpop.f32.mrf.mxu0
      %v437 = vadd.f32 0.0, %v436
      %v438 = vand.u32 %v318, 4294901760
      %v439 = vsub.f32 %v318, %v438
      %v440 = vand.u32 %v439, 4294901760
      %v441 = vsub.f32 %v439, %v440
      %v442 = vand.u32 %v441, 4294901760
      %443 = vmatmul.f32.gmra.mxu0 %v442
      %v444 = vpop.f32.mrf.mxu0
      %v445 = vadd.f32 0.0, %v444
      %v446 = vand.u32 %v321, 4294901760
      %v447 = vsub.f32 %v321, %v446
      %v448 = vand.u32 %v447, 4294901760
      %v449 = vsub.f32 %v447, %v448
      %v450 = vand.u32 %v449, 4294901760
      %451 = vmatmul.f32.gmra.mxu0 %v450
      %v452 = vpop.f32.mrf.mxu0
      %v453 = vadd.f32 0.0, %v452
      %v454 = vand.u32 %v324, 4294901760
      %v455 = vsub.f32 %v324, %v454
      %v456 = vand.u32 %v455, 4294901760
      %v457 = vsub.f32 %v455, %v456
      %v458 = vand.u32 %v457, 4294901760
      %459 = vmatmul.f32.gmra.mxu0 %v458
      %v460 = vpop.f32.mrf.mxu0
      %v461 = vadd.f32 0.0, %v460
      %v462 = vand.u32 %v327, 4294901760
      %v463 = vsub.f32 %v327, %v462
      %v464 = vand.u32 %v463, 4294901760
      %v465 = vsub.f32 %v463, %v464
      %v466 = vand.u32 %v465, 4294901760
      %467 = vmatmul.f32.gmra.mxu0 %v466
      %v468 = vpop.f32.mrf.mxu0
      %v469 = vadd.f32 0.0, %v468
      %v470 = vand.u32 %v330, 4294901760
      %v471 = vsub.f32 %v330, %v470
      %v472 = vand.u32 %v471, 4294901760
      %v473 = vsub.f32 %v471, %v472
      %v474 = vand.u32 %v473, 4294901760
      %475 = vmatmul.f32.gmra.mxu0 %v474
      %v476 = vpop.f32.mrf.mxu0
      %v477 = vadd.f32 0.0, %v476
      %478 = vdwg.mxu0
      %479 = vmatpush.msra.mxu0 0.0
      %480 = vmatpush.msra.mxu0 0.0
      %481 = vmatpush.msra.mxu0 0.0
      %482 = vmatpush.msra.mxu0 0.0
      %483 = vmatpush.msra.mxu0 0.0
      %484 = vmatpush.msra.mxu0 0.0
      %485 = vmatpush.msra.mxu0 0.0
      %486 = vmatpush.msra.mxu0 0.0
      %487 = vmatpush.msra.mxu0 0.0
      %488 = vmatpush.msra.mxu0 0.0
      %489 = vmatpush.msra.mxu0 0.0
      %490 = vmatpush.msra.mxu0 0.0
      %491 = vmatpush.msra.mxu0 0.0
      %492 = vmatpush.msra.mxu0 0.0
      %v493 = vand.u32 %v282, 4294901760
      %v494 = vsub.f32 %v282, %v493
      %v495 = vand.u32 %v494, 4294901760
      %v496 = vsub.f32 %v494, %v495
      %v497 = vand.u32 %v496, 4294901760
      %498 = vmatpush.msra.mxu0 %v497
      %v499 = vand.u32 %v281, 4294901760
      %v500 = vsub.f32 %v281, %v499
      %v501 = vand.u32 %v500, 4294901760
      %v502 = vsub.f32 %v500, %v501
      %v503 = vand.u32 %v502, 4294901760
      %504 = vmatpush.msra.mxu0 %v503
      %v505 = vand.u32 %v285, 4294901760
      %506 = vmatmul.f32.gmra.mxu0 %v505
      %v507 = vpop.f32.mrf.mxu0
      %v508 = vadd.f32 %v357, %v507
      %v509 = vand.u32 %v288, 4294901760
      %510 = vmatmul.f32.gmra.mxu0 %v509
      %v511 = vpop.f32.mrf.mxu0
      %v512 = vadd.f32 %v365, %v511
      %v513 = vand.u32 %v291, 4294901760
      %514 = vmatmul.f32.gmra.mxu0 %v513
      %v515 = vpop.f32.mrf.mxu0
      %v516 = vadd.f32 %v373, %v515
      %v517 = vand.u32 %v294, 4294901760
      %518 = vmatmul.f32.gmra.mxu0 %v517
      %v519 = vpop.f32.mrf.mxu0
      %v520 = vadd.f32 %v381, %v519
      %v521 = vand.u32 %v297, 4294901760
      %522 = vmatmul.f32.gmra.mxu0 %v521
      %v523 = vpop.f32.mrf.mxu0
      %v524 = vadd.f32 %v389, %v523
      %v525 = vand.u32 %v300, 4294901760
      %526 = vmatmul.f32.gmra.mxu0 %v525
      %v527 = vpop.f32.mrf.mxu0
      %v528 = vadd.f32 %v397, %v527
      %v529 = vand.u32 %v303, 4294901760
      %530 = vmatmul.f32.gmra.mxu0 %v529
      %v531 = vpop.f32.mrf.mxu0
      %v532 = vadd.f32 %v405, %v531
      %v533 = vand.u32 %v306, 4294901760
      %534 = vmatmul.f32.gmra.mxu0 %v533
      %v535 = vpop.f32.mrf.mxu0
      %v536 = vadd.f32 %v413, %v535
      %v537 = vand.u32 %v309, 4294901760
      %538 = vmatmul.f32.gmra.mxu0 %v537
      %v539 = vpop.f32.mrf.mxu0
      %v540 = vadd.f32 %v421, %v539
      %v541 = vand.u32 %v312, 4294901760
      %542 = vmatmul.f32.gmra.mxu0 %v541
      %v543 = vpop.f32.mrf.mxu0
      %v544 = vadd.f32 %v429, %v543
      %v545 = vand.u32 %v315, 4294901760
      %546 = vmatmul.f32.gmra.mxu0 %v545
      %v547 = vpop.f32.mrf.mxu0
      %v548 = vadd.f32 %v437, %v547
      %v549 = vand.u32 %v318, 4294901760
      %550 = vmatmul.f32.gmra.mxu0 %v549
      %v551 = vpop.f32.mrf.mxu0
      %v552 = vadd.f32 %v445, %v551
      %v553 = vand.u32 %v321, 4294901760
      %554 = vmatmul.f32.gmra.mxu0 %v553
      %v555 = vpop.f32.mrf.mxu0
      %v556 = vadd.f32 %v453, %v555
      %v557 = vand.u32 %v324, 4294901760
      %558 = vmatmul.f32.gmra.mxu0 %v557
      %v559 = vpop.f32.mrf.mxu0
      %v560 = vadd.f32 %v461, %v559
      %v561 = vand.u32 %v327, 4294901760
      %562 = vmatmul.f32.gmra.mxu0 %v561
      %v563 = vpop.f32.mrf.mxu0
      %v564 = vadd.f32 %v469, %v563
      %v565 = vand.u32 %v330, 4294901760
      %566 = vmatmul.f32.gmra.mxu0 %v565
      %v567 = vpop.f32.mrf.mxu0
      %v568 = vadd.f32 %v477, %v567
      %569 = vdwg.mxu0
      %570 = vmatpush.msra.mxu0 0.0
      %571 = vmatpush.msra.mxu0 0.0
      %572 = vmatpush.msra.mxu0 0.0
      %573 = vmatpush.msra.mxu0 0.0
      %574 = vmatpush.msra.mxu0 0.0
      %575 = vmatpush.msra.mxu0 0.0
      %576 = vmatpush.msra.mxu0 0.0
      %577 = vmatpush.msra.mxu0 0.0
      %578 = vmatpush.msra.mxu0 0.0
      %579 = vmatpush.msra.mxu0 0.0
      %580 = vmatpush.msra.mxu0 0.0
      %581 = vmatpush.msra.mxu0 0.0
      %582 = vmatpush.msra.mxu0 0.0
      %583 = vmatpush.msra.mxu0 0.0
      %v584 = vand.u32 %v282, 4294901760
      %v585 = vsub.f32 %v282, %v584
      %586 = vmatpush.msra.mxu0 %v585
      %v587 = vand.u32 %v281, 4294901760
      %v588 = vsub.f32 %v281, %v587
      %589 = vmatpush.msra.mxu0 %v588
      %v590 = vand.u32 %v285, 4294901760
      %v591 = vsub.f32 %v285, %v590
      %592 = vmatmul.f32.gmra.mxu0 %v591
      %v593 = vpop.f32.mrf.mxu0
      %v594 = vadd.f32 %v508, %v593
      %v595 = vand.u32 %v288, 4294901760
      %v596 = vsub.f32 %v288, %v595
      %597 = vmatmul.f32.gmra.mxu0 %v596
      %v598 = vpop.f32.mrf.mxu0
      %v599 = vadd.f32 %v512, %v598
      %v600 = vand.u32 %v291, 4294901760
      %v601 = vsub.f32 %v291, %v600
      %602 = vmatmul.f32.gmra.mxu0 %v601
      %v603 = vpop.f32.mrf.mxu0
      %v604 = vadd.f32 %v516, %v603
      %v605 = vand.u32 %v294, 4294901760
      %v606 = vsub.f32 %v294, %v605
      %607 = vmatmul.f32.gmra.mxu0 %v606
      %v608 = vpop.f32.mrf.mxu0
      %v609 = vadd.f32 %v520, %v608
      %v610 = vand.u32 %v297, 4294901760
      %v611 = vsub.f32 %v297, %v610
      %612 = vmatmul.f32.gmra.mxu0 %v611
      %v613 = vpop.f32.mrf.mxu0
      %v614 = vadd.f32 %v524, %v613
      %v615 = vand.u32 %v300, 4294901760
      %v616 = vsub.f32 %v300, %v615
      %617 = vmatmul.f32.gmra.mxu0 %v616
      %v618 = vpop.f32.mrf.mxu0
      %v619 = vadd.f32 %v528, %v618
      %v620 = vand.u32 %v303, 4294901760
      %v621 = vsub.f32 %v303, %v620
      %622 = vmatmul.f32.gmra.mxu0 %v621
      %v623 = vpop.f32.mrf.mxu0
      %v624 = vadd.f32 %v532, %v623
      %v625 = vand.u32 %v306, 4294901760
      %v626 = vsub.f32 %v306, %v625
      %627 = vmatmul.f32.gmra.mxu0 %v626
      %v628 = vpop.f32.mrf.mxu0
      %v629 = vadd.f32 %v536, %v628
      %v630 = vand.u32 %v309, 4294901760
      %v631 = vsub.f32 %v309, %v630
      %632 = vmatmul.f32.gmra.mxu0 %v631
      %v633 = vpop.f32.mrf.mxu0
      %v634 = vadd.f32 %v540, %v633
      %v635 = vand.u32 %v312, 4294901760
      %v636 = vsub.f32 %v312, %v635
      %637 = vmatmul.f32.gmra.mxu0 %v636
      %v638 = vpop.f32.mrf.mxu0
      %v639 = vadd.f32 %v544, %v638
      %v640 = vand.u32 %v315, 4294901760
      %v641 = vsub.f32 %v315, %v640
      %642 = vmatmul.f32.gmra.mxu0 %v641
      %v643 = vpop.f32.mrf.mxu0
      %v644 = vadd.f32 %v548, %v643
      %v645 = vand.u32 %v318, 4294901760
      %v646 = vsub.f32 %v318, %v645
      %647 = vmatmul.f32.gmra.mxu0 %v646
      %v648 = vpop.f32.mrf.mxu0
      %v649 = vadd.f32 %v552, %v648
      %v650 = vand.u32 %v321, 4294901760
      %v651 = vsub.f32 %v321, %v650
      %652 = vmatmul.f32.gmra.mxu0 %v651
      %v653 = vpop.f32.mrf.mxu0
      %v654 = vadd.f32 %v556, %v653
      %v655 = vand.u32 %v324, 4294901760
      %v656 = vsub.f32 %v324, %v655
      %657 = vmatmul.f32.gmra.mxu0 %v656
      %v658 = vpop.f32.mrf.mxu0
      %v659 = vadd.f32 %v560, %v658
      %v660 = vand.u32 %v327, 4294901760
      %v661 = vsub.f32 %v327, %v660
      %662 = vmatmul.f32.gmra.mxu0 %v661
      %v663 = vpop.f32.mrf.mxu0
      %v664 = vadd.f32 %v564, %v663
      %v665 = vand.u32 %v330, 4294901760
      %v666 = vsub.f32 %v330, %v665
      %667 = vmatmul.f32.gmra.mxu0 %v666
      %v668 = vpop.f32.mrf.mxu0
      %v669 = vadd.f32 %v568, %v668
      %670 = vdwg.mxu0
      %671 = vmatpush.msra.mxu0 0.0
      %672 = vmatpush.msra.mxu0 0.0
      %673 = vmatpush.msra.mxu0 0.0
      %674 = vmatpush.msra.mxu0 0.0
      %675 = vmatpush.msra.mxu0 0.0
      %676 = vmatpush.msra.mxu0 0.0
      %677 = vmatpush.msra.mxu0 0.0
      %678 = vmatpush.msra.mxu0 0.0
      %679 = vmatpush.msra.mxu0 0.0
      %680 = vmatpush.msra.mxu0 0.0
      %681 = vmatpush.msra.mxu0 0.0
      %682 = vmatpush.msra.mxu0 0.0
      %683 = vmatpush.msra.mxu0 0.0
      %684 = vmatpush.msra.mxu0 0.0
      %v685 = vand.u32 %v282, 4294901760
      %686 = vmatpush.msra.mxu0 %v685
      %v687 = vand.u32 %v281, 4294901760
      %688 = vmatpush.msra.mxu0 %v687
      %v689 = vand.u32 %v285, 4294901760
      %v690 = vsub.f32 %v285, %v689
      %v691 = vand.u32 %v690, 4294901760
      %692 = vmatmul.f32.gmra.mxu0 %v691
      %v693 = vpop.f32.mrf.mxu0
      %v694 = vadd.f32 %v594, %v693
      %v695 = vand.u32 %v288, 4294901760
      %v696 = vsub.f32 %v288, %v695
      %v697 = vand.u32 %v696, 4294901760
      %698 = vmatmul.f32.gmra.mxu0 %v697
      %v699 = vpop.f32.mrf.mxu0
      %v700 = vadd.f32 %v599, %v699
      %v701 = vand.u32 %v291, 4294901760
      %v702 = vsub.f32 %v291, %v701
      %v703 = vand.u32 %v702, 4294901760
      %704 = vmatmul.f32.gmra.mxu0 %v703
      %v705 = vpop.f32.mrf.mxu0
      %v706 = vadd.f32 %v604, %v705
      %v707 = vand.u32 %v294, 4294901760
      %v708 = vsub.f32 %v294, %v707
      %v709 = vand.u32 %v708, 4294901760
      %710 = vmatmul.f32.gmra.mxu0 %v709
      %v711 = vpop.f32.mrf.mxu0
      %v712 = vadd.f32 %v609, %v711
      %v713 = vand.u32 %v297, 4294901760
      %v714 = vsub.f32 %v297, %v713
      %v715 = vand.u32 %v714, 4294901760
      %716 = vmatmul.f32.gmra.mxu0 %v715
      %v717 = vpop.f32.mrf.mxu0
      %v718 = vadd.f32 %v614, %v717
      %v719 = vand.u32 %v300, 4294901760
      %v720 = vsub.f32 %v300, %v719
      %v721 = vand.u32 %v720, 4294901760
      %722 = vmatmul.f32.gmra.mxu0 %v721
      %v723 = vpop.f32.mrf.mxu0
      %v724 = vadd.f32 %v619, %v723
      %v725 = vand.u32 %v303, 4294901760
      %v726 = vsub.f32 %v303, %v725
      %v727 = vand.u32 %v726, 4294901760
      %728 = vmatmul.f32.gmra.mxu0 %v727
      %v729 = vpop.f32.mrf.mxu0
      %v730 = vadd.f32 %v624, %v729
      %v731 = vand.u32 %v306, 4294901760
      %v732 = vsub.f32 %v306, %v731
      %v733 = vand.u32 %v732, 4294901760
      %734 = vmatmul.f32.gmra.mxu0 %v733
      %v735 = vpop.f32.mrf.mxu0
      %v736 = vadd.f32 %v629, %v735
      %v737 = vand.u32 %v309, 4294901760
      %v738 = vsub.f32 %v309, %v737
      %v739 = vand.u32 %v738, 4294901760
      %740 = vmatmul.f32.gmra.mxu0 %v739
      %v741 = vpop.f32.mrf.mxu0
      %v742 = vadd.f32 %v634, %v741
      %v743 = vand.u32 %v312, 4294901760
      %v744 = vsub.f32 %v312, %v743
      %v745 = vand.u32 %v744, 4294901760
      %746 = vmatmul.f32.gmra.mxu0 %v745
      %v747 = vpop.f32.mrf.mxu0
      %v748 = vadd.f32 %v639, %v747
      %v749 = vand.u32 %v315, 4294901760
      %v750 = vsub.f32 %v315, %v749
      %v751 = vand.u32 %v750, 4294901760
      %752 = vmatmul.f32.gmra.mxu0 %v751
      %v753 = vpop.f32.mrf.mxu0
      %v754 = vadd.f32 %v644, %v753
      %v755 = vand.u32 %v318, 4294901760
      %v756 = vsub.f32 %v318, %v755
      %v757 = vand.u32 %v756, 4294901760
      %758 = vmatmul.f32.gmra.mxu0 %v757
      %v759 = vpop.f32.mrf.mxu0
      %v760 = vadd.f32 %v649, %v759
      %v761 = vand.u32 %v321, 4294901760
      %v762 = vsub.f32 %v321, %v761
      %v763 = vand.u32 %v762, 4294901760
      %764 = vmatmul.f32.gmra.mxu0 %v763
      %v765 = vpop.f32.mrf.mxu0
      %v766 = vadd.f32 %v654, %v765
      %v767 = vand.u32 %v324, 4294901760
      %v768 = vsub.f32 %v324, %v767
      %v769 = vand.u32 %v768, 4294901760
      %770 = vmatmul.f32.gmra.mxu0 %v769
      %v771 = vpop.f32.mrf.mxu0
      %v772 = vadd.f32 %v659, %v771
      %v773 = vand.u32 %v327, 4294901760
      %v774 = vsub.f32 %v327, %v773
      %v775 = vand.u32 %v774, 4294901760
      %776 = vmatmul.f32.gmra.mxu0 %v775
      %v777 = vpop.f32.mrf.mxu0
      %v778 = vadd.f32 %v664, %v777
      %v779 = vand.u32 %v330, 4294901760
      %v780 = vsub.f32 %v330, %v779
      %v781 = vand.u32 %v780, 4294901760
      %782 = vmatmul.f32.gmra.mxu0 %v781
      %v783 = vpop.f32.mrf.mxu0
      %v784 = vadd.f32 %v669, %v783
      %785 = vdwg.mxu0
      %786 = vmatpush.msra.mxu0 0.0
      %787 = vmatpush.msra.mxu0 0.0
      %788 = vmatpush.msra.mxu0 0.0
      %789 = vmatpush.msra.mxu0 0.0
      %790 = vmatpush.msra.mxu0 0.0
      %791 = vmatpush.msra.mxu0 0.0
      %792 = vmatpush.msra.mxu0 0.0
      %793 = vmatpush.msra.mxu0 0.0
      %794 = vmatpush.msra.mxu0 0.0
      %795 = vmatpush.msra.mxu0 0.0
      %796 = vmatpush.msra.mxu0 0.0
      %797 = vmatpush.msra.mxu0 0.0
      %798 = vmatpush.msra.mxu0 0.0
      %799 = vmatpush.msra.mxu0 0.0
      %v800 = vand.u32 %v282, 4294901760
      %v801 = vsub.f32 %v282, %v800
      %v802 = vand.u32 %v801, 4294901760
      %803 = vmatpush.msra.mxu0 %v802
      %v804 = vand.u32 %v281, 4294901760
      %v805 = vsub.f32 %v281, %v804
      %v806 = vand.u32 %v805, 4294901760
      %807 = vmatpush.msra.mxu0 %v806
      %v808 = vand.u32 %v285, 4294901760
      %809 = vmatmul.f32.gmra.mxu0 %v808
      %v810 = vpop.f32.mrf.mxu0
      %v811 = vadd.f32 %v694, %v810
      %v812 = vand.u32 %v288, 4294901760
      %813 = vmatmul.f32.gmra.mxu0 %v812
      %v814 = vpop.f32.mrf.mxu0
      %v815 = vadd.f32 %v700, %v814
      %v816 = vand.u32 %v291, 4294901760
      %817 = vmatmul.f32.gmra.mxu0 %v816
      %v818 = vpop.f32.mrf.mxu0
      %v819 = vadd.f32 %v706, %v818
      %v820 = vand.u32 %v294, 4294901760
      %821 = vmatmul.f32.gmra.mxu0 %v820
      %v822 = vpop.f32.mrf.mxu0
      %v823 = vadd.f32 %v712, %v822
      %v824 = vand.u32 %v297, 4294901760
      %825 = vmatmul.f32.gmra.mxu0 %v824
      %v826 = vpop.f32.mrf.mxu0
      %v827 = vadd.f32 %v718, %v826
      %v828 = vand.u32 %v300, 4294901760
      %829 = vmatmul.f32.gmra.mxu0 %v828
      %v830 = vpop.f32.mrf.mxu0
      %v831 = vadd.f32 %v724, %v830
      %v832 = vand.u32 %v303, 4294901760
      %833 = vmatmul.f32.gmra.mxu0 %v832
      %v834 = vpop.f32.mrf.mxu0
      %v835 = vadd.f32 %v730, %v834
      %v836 = vand.u32 %v306, 4294901760
      %837 = vmatmul.f32.gmra.mxu0 %v836
      %v838 = vpop.f32.mrf.mxu0
      %v839 = vadd.f32 %v736, %v838
      %v840 = vand.u32 %v309, 4294901760
      %841 = vmatmul.f32.gmra.mxu0 %v840
      %v842 = vpop.f32.mrf.mxu0
      %v843 = vadd.f32 %v742, %v842
      %v844 = vand.u32 %v312, 4294901760
      %845 = vmatmul.f32.gmra.mxu0 %v844
      %v846 = vpop.f32.mrf.mxu0
      %v847 = vadd.f32 %v748, %v846
      %v848 = vand.u32 %v315, 4294901760
      %849 = vmatmul.f32.gmra.mxu0 %v848
      %v850 = vpop.f32.mrf.mxu0
      %v851 = vadd.f32 %v754, %v850
      %v852 = vand.u32 %v318, 4294901760
      %853 = vmatmul.f32.gmra.mxu0 %v852
      %v854 = vpop.f32.mrf.mxu0
      %v855 = vadd.f32 %v760, %v854
      %v856 = vand.u32 %v321, 4294901760
      %857 = vmatmul.f32.gmra.mxu0 %v856
      %v858 = vpop.f32.mrf.mxu0
      %v859 = vadd.f32 %v766, %v858
      %v860 = vand.u32 %v324, 4294901760
      %861 = vmatmul.f32.gmra.mxu0 %v860
      %v862 = vpop.f32.mrf.mxu0
      %v863 = vadd.f32 %v772, %v862
      %v864 = vand.u32 %v327, 4294901760
      %865 = vmatmul.f32.gmra.mxu0 %v864
      %v866 = vpop.f32.mrf.mxu0
      %v867 = vadd.f32 %v778, %v866
      %v868 = vand.u32 %v330, 4294901760
      %869 = vmatmul.f32.gmra.mxu0 %v868
      %v870 = vpop.f32.mrf.mxu0
      %v871 = vadd.f32 %v784, %v870
      %872 = vdwg.mxu0
      %873 = vmatpush.msra.mxu0 0.0
      %874 = vmatpush.msra.mxu0 0.0
      %875 = vmatpush.msra.mxu0 0.0
      %876 = vmatpush.msra.mxu0 0.0
      %877 = vmatpush.msra.mxu0 0.0
      %878 = vmatpush.msra.mxu0 0.0
      %879 = vmatpush.msra.mxu0 0.0
      %880 = vmatpush.msra.mxu0 0.0
      %881 = vmatpush.msra.mxu0 0.0
      %882 = vmatpush.msra.mxu0 0.0
      %883 = vmatpush.msra.mxu0 0.0
      %884 = vmatpush.msra.mxu0 0.0
      %885 = vmatpush.msra.mxu0 0.0
      %886 = vmatpush.msra.mxu0 0.0
      %v887 = vand.u32 %v282, 4294901760
      %888 = vmatpush.msra.mxu0 %v887
      %v889 = vand.u32 %v281, 4294901760
      %890 = vmatpush.msra.mxu0 %v889
      %v891 = vand.u32 %v285, 4294901760
      %892 = vmatmul.f32.gmra.mxu0 %v891
      %v893 = vpop.f32.mrf.mxu0
      %v894 = vadd.f32 %v811, %v893
      %v895 = vand.u32 %v288, 4294901760
      %896 = vmatmul.f32.gmra.mxu0 %v895
      %v897 = vpop.f32.mrf.mxu0
      %v898 = vadd.f32 %v815, %v897
      %v899 = vand.u32 %v291, 4294901760
      %900 = vmatmul.f32.gmra.mxu0 %v899
      %v901 = vpop.f32.mrf.mxu0
      %v902 = vadd.f32 %v819, %v901
      %v903 = vand.u32 %v294, 4294901760
      %904 = vmatmul.f32.gmra.mxu0 %v903
      %v905 = vpop.f32.mrf.mxu0
      %v906 = vadd.f32 %v823, %v905
      %v907 = vand.u32 %v297, 4294901760
      %908 = vmatmul.f32.gmra.mxu0 %v907
      %v909 = vpop.f32.mrf.mxu0
      %v910 = vadd.f32 %v827, %v909
      %v911 = vand.u32 %v300, 4294901760
      %912 = vmatmul.f32.gmra.mxu0 %v911
      %v913 = vpop.f32.mrf.mxu0
      %v914 = vadd.f32 %v831, %v913
      %v915 = vand.u32 %v303, 4294901760
      %916 = vmatmul.f32.gmra.mxu0 %v915
      %v917 = vpop.f32.mrf.mxu0
      %v918 = vadd.f32 %v835, %v917
      %v919 = vand.u32 %v306, 4294901760
      %920 = vmatmul.f32.gmra.mxu0 %v919
      %v921 = vpop.f32.mrf.mxu0
      %v922 = vadd.f32 %v839, %v921
      %v923 = vand.u32 %v309, 4294901760
      %924 = vmatmul.f32.gmra.mxu0 %v923
      %v925 = vpop.f32.mrf.mxu0
      %v926 = vadd.f32 %v843, %v925
      %v927 = vand.u32 %v312, 4294901760
      %928 = vmatmul.f32.gmra.mxu0 %v927
      %v929 = vpop.f32.mrf.mxu0
      %v930 = vadd.f32 %v847, %v929
      %v931 = vand.u32 %v315, 4294901760
      %932 = vmatmul.f32.gmra.mxu0 %v931
      %v933 = vpop.f32.mrf.mxu0
      %v934 = vadd.f32 %v851, %v933
      %v935 = vand.u32 %v318, 4294901760
      %936 = vmatmul.f32.gmra.mxu0 %v935
      %v937 = vpop.f32.mrf.mxu0
      %v938 = vadd.f32 %v855, %v937
      %v939 = vand.u32 %v321, 4294901760
      %940 = vmatmul.f32.gmra.mxu0 %v939
      %v941 = vpop.f32.mrf.mxu0
      %v942 = vadd.f32 %v859, %v941
      %v943 = vand.u32 %v324, 4294901760
      %944 = vmatmul.f32.gmra.mxu0 %v943
      %v945 = vpop.f32.mrf.mxu0
      %v946 = vadd.f32 %v863, %v945
      %v947 = vand.u32 %v327, 4294901760
      %948 = vmatmul.f32.gmra.mxu0 %v947
      %v949 = vpop.f32.mrf.mxu0
      %v950 = vadd.f32 %v867, %v949
      %v951 = vand.u32 %v330, 4294901760
      %952 = vmatmul.f32.gmra.mxu0 %v951
      %v953 = vpop.f32.mrf.mxu0
      %v954 = vadd.f32 %v871, %v953
      %955 = vdwg.mxu0
      %v956 = vround.ne.pseudo %v894
      %v957 = vround.ne.pseudo %v898
      %v958 = vround.ne.pseudo %v902
      %v959 = vround.ne.pseudo %v906
      %v960 = vround.ne.pseudo %v910
      %v961 = vround.ne.pseudo %v914
      %v962 = vround.ne.pseudo %v918
      %v963 = vround.ne.pseudo %v922
      %v964 = vround.ne.pseudo %v926
      %v965 = vround.ne.pseudo %v930
      %v966 = vround.ne.pseudo %v934
      %v967 = vround.ne.pseudo %v938
      %v968 = vround.ne.pseudo %v942
      %v969 = vround.ne.pseudo %v946
      %v970 = vround.ne.pseudo %v950
      %v971 = vround.ne.pseudo %v954
      %v972 = vmax.f32 %v956, 0.0
      %v973 = vmax.f32 %v957, 0.0
      %v974 = vmax.f32 %v958, 0.0
      %v975 = vmax.f32 %v959, 0.0
      %v976 = vmax.f32 %v960, 0.0
      %v977 = vmax.f32 %v961, 0.0
      %v978 = vmax.f32 %v962, 0.0
      %v979 = vmax.f32 %v963, 0.0
      %v980 = vmax.f32 %v964, 0.0
      %v981 = vmax.f32 %v965, 0.0
      %v982 = vmax.f32 %v966, 0.0
      %v983 = vmax.f32 %v967, 0.0
      %v984 = vmax.f32 %v968, 0.0
      %v985 = vmax.f32 %v969, 0.0
      %v986 = vmax.f32 %v970, 0.0
      %v987 = vmax.f32 %v971, 0.0
      %v988 = vmin.f32 %v972, 2047.0
      %v989 = vmin.f32 %v973, 2047.0
      %v990 = vmin.f32 %v974, 2047.0
      %v991 = vmin.f32 %v975, 2047.0
      %v992 = vmin.f32 %v976, 2047.0
      %v993 = vmin.f32 %v977, 2047.0
      %v994 = vmin.f32 %v978, 2047.0
      %v995 = vmin.f32 %v979, 2047.0
      %v996 = vmin.f32 %v980, 2047.0
      %v997 = vmin.f32 %v981, 2047.0
      %v998 = vmin.f32 %v982, 2047.0
      %v999 = vmin.f32 %v983, 2047.0
      %v1000 = vmin.f32 %v984, 2047.0
      %v1001 = vmin.f32 %v985, 2047.0
      %v1002 = vmin.f32 %v986, 2047.0
      %v1003 = vmin.f32 %v987, 2047.0
      %v1004 = vld [vmem:[%s2] sm:$0xff]
      %v1005 = vld [vmem:[%s2 + $0x8] sm:$0xff]
      %v1006 = vld [vmem:[%s2 + $0x10] sm:$0xff]
      %v1007 = vld [vmem:[%s2 + $0x18] sm:$0xff]
      %v1008 = vld [vmem:[%s2 + $0x20] sm:$0xff]
      %v1009 = vld [vmem:[%s2 + $0x28] sm:$0xff]
      %v1010 = vld [vmem:[%s2 + $0x30] sm:$0xff]
      %v1011 = vld [vmem:[%s2 + $0x38] sm:$0xff]
      %vm1012 = vcmask 523264
      %v1014 = vsel %vm1012, %v988, 0
      %v1017 = vsel %vm1012, %v989, 0
      %v1020 = vsel %vm1012, %v990, 0
      %v1023 = vsel %vm1012, %v991, 0
      %v1026 = vsel %vm1012, %v992, 0
      %v1029 = vsel %vm1012, %v993, 0
      %v1032 = vsel %vm1012, %v994, 0
      %v1035 = vsel %vm1012, %v995, 0
      %v1038 = vsel %vm1012, %v996, 0
      %v1041 = vsel %vm1012, %v997, 0
      %v1044 = vsel %vm1012, %v998, 0
      %v1047 = vsel %vm1012, %v999, 0
      %v1050 = vsel %vm1012, %v1000, 0
      %v1053 = vsel %vm1012, %v1001, 0
      %v1056 = vsel %vm1012, %v1002, 0
      %v1059 = vsel %vm1012, %v1003, 0
      %1061 = vmatpush.msra.mxu0 0.0
      %1062 = vmatpush.msra.mxu0 0.0
      %1063 = vmatpush.msra.mxu0 0.0
      %1064 = vmatpush.msra.mxu0 0.0
      %1065 = vmatpush.msra.mxu0 0.0
      %1066 = vmatpush.msra.mxu0 0.0
      %1067 = vmatpush.msra.mxu0 0.0
      %1068 = vmatpush.msra.mxu0 0.0
      %v1069 = vand.u32 %v1011, 4294901760
      %1070 = vmatpush.msra.mxu0 %v1069
      %v1071 = vand.u32 %v1010, 4294901760
      %1072 = vmatpush.msra.mxu0 %v1071
      %v1073 = vand.u32 %v1009, 4294901760
      %1074 = vmatpush.msra.mxu0 %v1073
      %v1075 = vand.u32 %v1008, 4294901760
      %1076 = vmatpush.msra.mxu0 %v1075
      %v1077 = vand.u32 %v1007, 4294901760
      %1078 = vmatpush.msra.mxu0 %v1077
      %v1079 = vand.u32 %v1006, 4294901760
      %1080 = vmatpush.msra.mxu0 %v1079
      %v1081 = vand.u32 %v1005, 4294901760
      %1082 = vmatpush.msra.mxu0 %v1081
      %v1083 = vand.u32 %v1004, 4294901760
      %1084 = vmatpush.msra.mxu0 %v1083
      %v1085 = vand.u32 %v1014, 4294901760
      %v1086 = vsub.f32 %v1014, %v1085
      %v1087 = vand.u32 %v1086, 4294901760
      %v1088 = vsub.f32 %v1086, %v1087
      %v1089 = vand.u32 %v1088, 4294901760
      %1090 = vmatmul.f32.gmra.mxu0 %v1089
      %v1091 = vpop.f32.mrf.mxu0
      %v1092 = vadd.f32 0.0, %v1091
      %v1093 = vand.u32 %v1017, 4294901760
      %v1094 = vsub.f32 %v1017, %v1093
      %v1095 = vand.u32 %v1094, 4294901760
      %v1096 = vsub.f32 %v1094, %v1095
      %v1097 = vand.u32 %v1096, 4294901760
      %1098 = vmatmul.f32.gmra.mxu0 %v1097
      %v1099 = vpop.f32.mrf.mxu0
      %v1100 = vadd.f32 0.0, %v1099
      %v1101 = vand.u32 %v1020, 4294901760
      %v1102 = vsub.f32 %v1020, %v1101
      %v1103 = vand.u32 %v1102, 4294901760
      %v1104 = vsub.f32 %v1102, %v1103
      %v1105 = vand.u32 %v1104, 4294901760
      %1106 = vmatmul.f32.gmra.mxu0 %v1105
      %v1107 = vpop.f32.mrf.mxu0
      %v1108 = vadd.f32 0.0, %v1107
      %v1109 = vand.u32 %v1023, 4294901760
      %v1110 = vsub.f32 %v1023, %v1109
      %v1111 = vand.u32 %v1110, 4294901760
      %v1112 = vsub.f32 %v1110, %v1111
      %v1113 = vand.u32 %v1112, 4294901760
      %1114 = vmatmul.f32.gmra.mxu0 %v1113
      %v1115 = vpop.f32.mrf.mxu0
      %v1116 = vadd.f32 0.0, %v1115
      %v1117 = vand.u32 %v1026, 4294901760
      %v1118 = vsub.f32 %v1026, %v1117
      %v1119 = vand.u32 %v1118, 4294901760
      %v1120 = vsub.f32 %v1118, %v1119
      %v1121 = vand.u32 %v1120, 4294901760
      %1122 = vmatmul.f32.gmra.mxu0 %v1121
      %v1123 = vpop.f32.mrf.mxu0
      %v1124 = vadd.f32 0.0, %v1123
      %v1125 = vand.u32 %v1029, 4294901760
      %v1126 = vsub.f32 %v1029, %v1125
      %v1127 = vand.u32 %v1126, 4294901760
      %v1128 = vsub.f32 %v1126, %v1127
      %v1129 = vand.u32 %v1128, 4294901760
      %1130 = vmatmul.f32.gmra.mxu0 %v1129
      %v1131 = vpop.f32.mrf.mxu0
      %v1132 = vadd.f32 0.0, %v1131
      %v1133 = vand.u32 %v1032, 4294901760
      %v1134 = vsub.f32 %v1032, %v1133
      %v1135 = vand.u32 %v1134, 4294901760
      %v1136 = vsub.f32 %v1134, %v1135
      %v1137 = vand.u32 %v1136, 4294901760
      %1138 = vmatmul.f32.gmra.mxu0 %v1137
      %v1139 = vpop.f32.mrf.mxu0
      %v1140 = vadd.f32 0.0, %v1139
      %v1141 = vand.u32 %v1035, 4294901760
      %v1142 = vsub.f32 %v1035, %v1141
      %v1143 = vand.u32 %v1142, 4294901760
      %v1144 = vsub.f32 %v1142, %v1143
      %v1145 = vand.u32 %v1144, 4294901760
      %1146 = vmatmul.f32.gmra.mxu0 %v1145
      %v1147 = vpop.f32.mrf.mxu0
      %v1148 = vadd.f32 0.0, %v1147
      %v1149 = vand.u32 %v1038, 4294901760
      %v1150 = vsub.f32 %v1038, %v1149
      %v1151 = vand.u32 %v1150, 4294901760
      %v1152 = vsub.f32 %v1150, %v1151
      %v1153 = vand.u32 %v1152, 4294901760
      %1154 = vmatmul.f32.gmra.mxu0 %v1153
      %v1155 = vpop.f32.mrf.mxu0
      %v1156 = vadd.f32 0.0, %v1155
      %v1157 = vand.u32 %v1041, 4294901760
      %v1158 = vsub.f32 %v1041, %v1157
      %v1159 = vand.u32 %v1158, 4294901760
      %v1160 = vsub.f32 %v1158, %v1159
      %v1161 = vand.u32 %v1160, 4294901760
      %1162 = vmatmul.f32.gmra.mxu0 %v1161
      %v1163 = vpop.f32.mrf.mxu0
      %v1164 = vadd.f32 0.0, %v1163
      %v1165 = vand.u32 %v1044, 4294901760
      %v1166 = vsub.f32 %v1044, %v1165
      %v1167 = vand.u32 %v1166, 4294901760
      %v1168 = vsub.f32 %v1166, %v1167
      %v1169 = vand.u32 %v1168, 4294901760
      %1170 = vmatmul.f32.gmra.mxu0 %v1169
      %v1171 = vpop.f32.mrf.mxu0
      %v1172 = vadd.f32 0.0, %v1171
      %v1173 = vand.u32 %v1047, 4294901760
      %v1174 = vsub.f32 %v1047, %v1173
      %v1175 = vand.u32 %v1174, 4294901760
      %v1176 = vsub.f32 %v1174, %v1175
      %v1177 = vand.u32 %v1176, 4294901760
      %1178 = vmatmul.f32.gmra.mxu0 %v1177
      %v1179 = vpop.f32.mrf.mxu0
      %v1180 = vadd.f32 0.0, %v1179
      %v1181 = vand.u32 %v1050, 4294901760
      %v1182 = vsub.f32 %v1050, %v1181
      %v1183 = vand.u32 %v1182, 4294901760
      %v1184 = vsub.f32 %v1182, %v1183
      %v1185 = vand.u32 %v1184, 4294901760
      %1186 = vmatmul.f32.gmra.mxu0 %v1185
      %v1187 = vpop.f32.mrf.mxu0
      %v1188 = vadd.f32 0.0, %v1187
      %v1189 = vand.u32 %v1053, 4294901760
      %v1190 = vsub.f32 %v1053, %v1189
      %v1191 = vand.u32 %v1190, 4294901760
      %v1192 = vsub.f32 %v1190, %v1191
      %v1193 = vand.u32 %v1192, 4294901760
      %1194 = vmatmul.f32.gmra.mxu0 %v1193
      %v1195 = vpop.f32.mrf.mxu0
      %v1196 = vadd.f32 0.0, %v1195
      %v1197 = vand.u32 %v1056, 4294901760
      %v1198 = vsub.f32 %v1056, %v1197
      %v1199 = vand.u32 %v1198, 4294901760
      %v1200 = vsub.f32 %v1198, %v1199
      %v1201 = vand.u32 %v1200, 4294901760
      %1202 = vmatmul.f32.gmra.mxu0 %v1201
      %v1203 = vpop.f32.mrf.mxu0
      %v1204 = vadd.f32 0.0, %v1203
      %v1205 = vand.u32 %v1059, 4294901760
      %v1206 = vsub.f32 %v1059, %v1205
      %v1207 = vand.u32 %v1206, 4294901760
      %v1208 = vsub.f32 %v1206, %v1207
      %v1209 = vand.u32 %v1208, 4294901760
      %1210 = vmatmul.f32.gmra.mxu0 %v1209
      %v1211 = vpop.f32.mrf.mxu0
      %v1212 = vadd.f32 0.0, %v1211
      %1213 = vdwg.mxu0
      %1214 = vmatpush.msra.mxu0 0.0
      %1215 = vmatpush.msra.mxu0 0.0
      %1216 = vmatpush.msra.mxu0 0.0
      %1217 = vmatpush.msra.mxu0 0.0
      %1218 = vmatpush.msra.mxu0 0.0
      %1219 = vmatpush.msra.mxu0 0.0
      %1220 = vmatpush.msra.mxu0 0.0
      %1221 = vmatpush.msra.mxu0 0.0
      %v1222 = vand.u32 %v1011, 4294901760
      %v1223 = vsub.f32 %v1011, %v1222
      %v1224 = vand.u32 %v1223, 4294901760
      %v1225 = vsub.f32 %v1223, %v1224
      %v1226 = vand.u32 %v1225, 4294901760
      %1227 = vmatpush.msra.mxu0 %v1226
      %v1228 = vand.u32 %v1010, 4294901760
      %v1229 = vsub.f32 %v1010, %v1228
      %v1230 = vand.u32 %v1229, 4294901760
      %v1231 = vsub.f32 %v1229, %v1230
      %v1232 = vand.u32 %v1231, 4294901760
      %1233 = vmatpush.msra.mxu0 %v1232
      %v1234 = vand.u32 %v1009, 4294901760
      %v1235 = vsub.f32 %v1009, %v1234
      %v1236 = vand.u32 %v1235, 4294901760
      %v1237 = vsub.f32 %v1235, %v1236
      %v1238 = vand.u32 %v1237, 4294901760
      %1239 = vmatpush.msra.mxu0 %v1238
      %v1240 = vand.u32 %v1008, 4294901760
      %v1241 = vsub.f32 %v1008, %v1240
      %v1242 = vand.u32 %v1241, 4294901760
      %v1243 = vsub.f32 %v1241, %v1242
      %v1244 = vand.u32 %v1243, 4294901760
      %1245 = vmatpush.msra.mxu0 %v1244
      %v1246 = vand.u32 %v1007, 4294901760
      %v1247 = vsub.f32 %v1007, %v1246
      %v1248 = vand.u32 %v1247, 4294901760
      %v1249 = vsub.f32 %v1247, %v1248
      %v1250 = vand.u32 %v1249, 4294901760
      %1251 = vmatpush.msra.mxu0 %v1250
      %v1252 = vand.u32 %v1006, 4294901760
      %v1253 = vsub.f32 %v1006, %v1252
      %v1254 = vand.u32 %v1253, 4294901760
      %v1255 = vsub.f32 %v1253, %v1254
      %v1256 = vand.u32 %v1255, 4294901760
      %1257 = vmatpush.msra.mxu0 %v1256
      %v1258 = vand.u32 %v1005, 4294901760
      %v1259 = vsub.f32 %v1005, %v1258
      %v1260 = vand.u32 %v1259, 4294901760
      %v1261 = vsub.f32 %v1259, %v1260
      %v1262 = vand.u32 %v1261, 4294901760
      %1263 = vmatpush.msra.mxu0 %v1262
      %v1264 = vand.u32 %v1004, 4294901760
      %v1265 = vsub.f32 %v1004, %v1264
      %v1266 = vand.u32 %v1265, 4294901760
      %v1267 = vsub.f32 %v1265, %v1266
      %v1268 = vand.u32 %v1267, 4294901760
      %1269 = vmatpush.msra.mxu0 %v1268
      %v1270 = vand.u32 %v1014, 4294901760
      %1271 = vmatmul.f32.gmra.mxu0 %v1270
      %v1272 = vpop.f32.mrf.mxu0
      %v1273 = vadd.f32 %v1092, %v1272
      %v1274 = vand.u32 %v1017, 4294901760
      %1275 = vmatmul.f32.gmra.mxu0 %v1274
      %v1276 = vpop.f32.mrf.mxu0
      %v1277 = vadd.f32 %v1100, %v1276
      %v1278 = vand.u32 %v1020, 4294901760
      %1279 = vmatmul.f32.gmra.mxu0 %v1278
      %v1280 = vpop.f32.mrf.mxu0
      %v1281 = vadd.f32 %v1108, %v1280
      %v1282 = vand.u32 %v1023, 4294901760
      %1283 = vmatmul.f32.gmra.mxu0 %v1282
      %v1284 = vpop.f32.mrf.mxu0
      %v1285 = vadd.f32 %v1116, %v1284
      %v1286 = vand.u32 %v1026, 4294901760
      %1287 = vmatmul.f32.gmra.mxu0 %v1286
      %v1288 = vpop.f32.mrf.mxu0
      %v1289 = vadd.f32 %v1124, %v1288
      %v1290 = vand.u32 %v1029, 4294901760
      %1291 = vmatmul.f32.gmra.mxu0 %v1290
      %v1292 = vpop.f32.mrf.mxu0
      %v1293 = vadd.f32 %v1132, %v1292
      %v1294 = vand.u32 %v1032, 4294901760
      %1295 = vmatmul.f32.gmra.mxu0 %v1294
      %v1296 = vpop.f32.mrf.mxu0
      %v1297 = vadd.f32 %v1140, %v1296
      %v1298 = vand.u32 %v1035, 4294901760
      %1299 = vmatmul.f32.gmra.mxu0 %v1298
      %v1300 = vpop.f32.mrf.mxu0
      %v1301 = vadd.f32 %v1148, %v1300
      %v1302 = vand.u32 %v1038, 4294901760
      %1303 = vmatmul.f32.gmra.mxu0 %v1302
      %v1304 = vpop.f32.mrf.mxu0
      %v1305 = vadd.f32 %v1156, %v1304
      %v1306 = vand.u32 %v1041, 4294901760
      %1307 = vmatmul.f32.gmra.mxu0 %v1306
      %v1308 = vpop.f32.mrf.mxu0
      %v1309 = vadd.f32 %v1164, %v1308
      %v1310 = vand.u32 %v1044, 4294901760
      %1311 = vmatmul.f32.gmra.mxu0 %v1310
      %v1312 = vpop.f32.mrf.mxu0
      %v1313 = vadd.f32 %v1172, %v1312
      %v1314 = vand.u32 %v1047, 4294901760
      %1315 = vmatmul.f32.gmra.mxu0 %v1314
      %v1316 = vpop.f32.mrf.mxu0
      %v1317 = vadd.f32 %v1180, %v1316
      %v1318 = vand.u32 %v1050, 4294901760
      %1319 = vmatmul.f32.gmra.mxu0 %v1318
      %v1320 = vpop.f32.mrf.mxu0
      %v1321 = vadd.f32 %v1188, %v1320
      %v1322 = vand.u32 %v1053, 4294901760
      %1323 = vmatmul.f32.gmra.mxu0 %v1322
      %v1324 = vpop.f32.mrf.mxu0
      %v1325 = vadd.f32 %v1196, %v1324
      %v1326 = vand.u32 %v1056, 4294901760
      %1327 = vmatmul.f32.gmra.mxu0 %v1326
      %v1328 = vpop.f32.mrf.mxu0
      %v1329 = vadd.f32 %v1204, %v1328
      %v1330 = vand.u32 %v1059, 4294901760
      %1331 = vmatmul.f32.gmra.mxu0 %v1330
      %v1332 = vpop.f32.mrf.mxu0
      %v1333 = vadd.f32 %v1212, %v1332
      %1334 = vdwg.mxu0
      %1335 = vmatpush.msra.mxu0 0.0
      %1336 = vmatpush.msra.mxu0 0.0
      %1337 = vmatpush.msra.mxu0 0.0
      %1338 = vmatpush.msra.mxu0 0.0
      %1339 = vmatpush.msra.mxu0 0.0
      %1340 = vmatpush.msra.mxu0 0.0
      %1341 = vmatpush.msra.mxu0 0.0
      %1342 = vmatpush.msra.mxu0 0.0
      %v1343 = vand.u32 %v1011, 4294901760
      %v1344 = vsub.f32 %v1011, %v1343
      %1345 = vmatpush.msra.mxu0 %v1344
      %v1346 = vand.u32 %v1010, 4294901760
      %v1347 = vsub.f32 %v1010, %v1346
      %1348 = vmatpush.msra.mxu0 %v1347
      %v1349 = vand.u32 %v1009, 4294901760
      %v1350 = vsub.f32 %v1009, %v1349
      %1351 = vmatpush.msra.mxu0 %v1350
      %v1352 = vand.u32 %v1008, 4294901760
      %v1353 = vsub.f32 %v1008, %v1352
      %1354 = vmatpush.msra.mxu0 %v1353
      %v1355 = vand.u32 %v1007, 4294901760
      %v1356 = vsub.f32 %v1007, %v1355
      %1357 = vmatpush.msra.mxu0 %v1356
      %v1358 = vand.u32 %v1006, 4294901760
      %v1359 = vsub.f32 %v1006, %v1358
      %1360 = vmatpush.msra.mxu0 %v1359
      %v1361 = vand.u32 %v1005, 4294901760
      %v1362 = vsub.f32 %v1005, %v1361
      %1363 = vmatpush.msra.mxu0 %v1362
      %v1364 = vand.u32 %v1004, 4294901760
      %v1365 = vsub.f32 %v1004, %v1364
      %1366 = vmatpush.msra.mxu0 %v1365
      %v1367 = vand.u32 %v1014, 4294901760
      %v1368 = vsub.f32 %v1014, %v1367
      %1369 = vmatmul.f32.gmra.mxu0 %v1368
      %v1370 = vpop.f32.mrf.mxu0
      %v1371 = vadd.f32 %v1273, %v1370
      %v1372 = vand.u32 %v1017, 4294901760
      %v1373 = vsub.f32 %v1017, %v1372
      %1374 = vmatmul.f32.gmra.mxu0 %v1373
      %v1375 = vpop.f32.mrf.mxu0
      %v1376 = vadd.f32 %v1277, %v1375
      %v1377 = vand.u32 %v1020, 4294901760
      %v1378 = vsub.f32 %v1020, %v1377
      %1379 = vmatmul.f32.gmra.mxu0 %v1378
      %v1380 = vpop.f32.mrf.mxu0
      %v1381 = vadd.f32 %v1281, %v1380
      %v1382 = vand.u32 %v1023, 4294901760
      %v1383 = vsub.f32 %v1023, %v1382
      %1384 = vmatmul.f32.gmra.mxu0 %v1383
      %v1385 = vpop.f32.mrf.mxu0
      %v1386 = vadd.f32 %v1285, %v1385
      %v1387 = vand.u32 %v1026, 4294901760
      %v1388 = vsub.f32 %v1026, %v1387
      %1389 = vmatmul.f32.gmra.mxu0 %v1388
      %v1390 = vpop.f32.mrf.mxu0
      %v1391 = vadd.f32 %v1289, %v1390
      %v1392 = vand.u32 %v1029, 4294901760
      %v1393 = vsub.f32 %v1029, %v1392
      %1394 = vmatmul.f32.gmra.mxu0 %v1393
      %v1395 = vpop.f32.mrf.mxu0
      %v1396 = vadd.f32 %v1293, %v1395
      %v1397 = vand.u32 %v1032, 4294901760
      %v1398 = vsub.f32 %v1032, %v1397
      %1399 = vmatmul.f32.gmra.mxu0 %v1398
      %v1400 = vpop.f32.mrf.mxu0
      %v1401 = vadd.f32 %v1297, %v1400
      %v1402 = vand.u32 %v1035, 4294901760
      %v1403 = vsub.f32 %v1035, %v1402
      %1404 = vmatmul.f32.gmra.mxu0 %v1403
      %v1405 = vpop.f32.mrf.mxu0
      %v1406 = vadd.f32 %v1301, %v1405
      %v1407 = vand.u32 %v1038, 4294901760
      %v1408 = vsub.f32 %v1038, %v1407
      %1409 = vmatmul.f32.gmra.mxu0 %v1408
      %v1410 = vpop.f32.mrf.mxu0
      %v1411 = vadd.f32 %v1305, %v1410
      %v1412 = vand.u32 %v1041, 4294901760
      %v1413 = vsub.f32 %v1041, %v1412
      %1414 = vmatmul.f32.gmra.mxu0 %v1413
      %v1415 = vpop.f32.mrf.mxu0
      %v1416 = vadd.f32 %v1309, %v1415
      %v1417 = vand.u32 %v1044, 4294901760
      %v1418 = vsub.f32 %v1044, %v1417
      %1419 = vmatmul.f32.gmra.mxu0 %v1418
      %v1420 = vpop.f32.mrf.mxu0
      %v1421 = vadd.f32 %v1313, %v1420
      %v1422 = vand.u32 %v1047, 4294901760
      %v1423 = vsub.f32 %v1047, %v1422
      %1424 = vmatmul.f32.gmra.mxu0 %v1423
      %v1425 = vpop.f32.mrf.mxu0
      %v1426 = vadd.f32 %v1317, %v1425
      %v1427 = vand.u32 %v1050, 4294901760
      %v1428 = vsub.f32 %v1050, %v1427
      %1429 = vmatmul.f32.gmra.mxu0 %v1428
      %v1430 = vpop.f32.mrf.mxu0
      %v1431 = vadd.f32 %v1321, %v1430
      %v1432 = vand.u32 %v1053, 4294901760
      %v1433 = vsub.f32 %v1053, %v1432
      %1434 = vmatmul.f32.gmra.mxu0 %v1433
      %v1435 = vpop.f32.mrf.mxu0
      %v1436 = vadd.f32 %v1325, %v1435
      %v1437 = vand.u32 %v1056, 4294901760
      %v1438 = vsub.f32 %v1056, %v1437
      %1439 = vmatmul.f32.gmra.mxu0 %v1438
      %v1440 = vpop.f32.mrf.mxu0
      %v1441 = vadd.f32 %v1329, %v1440
      %v1442 = vand.u32 %v1059, 4294901760
      %v1443 = vsub.f32 %v1059, %v1442
      %1444 = vmatmul.f32.gmra.mxu0 %v1443
      %v1445 = vpop.f32.mrf.mxu0
      %v1446 = vadd.f32 %v1333, %v1445
      %1447 = vdwg.mxu0
      %1448 = vmatpush.msra.mxu0 0.0
      %1449 = vmatpush.msra.mxu0 0.0
      %1450 = vmatpush.msra.mxu0 0.0
      %1451 = vmatpush.msra.mxu0 0.0
      %1452 = vmatpush.msra.mxu0 0.0
      %1453 = vmatpush.msra.mxu0 0.0
      %1454 = vmatpush.msra.mxu0 0.0
      %1455 = vmatpush.msra.mxu0 0.0
      %v1456 = vand.u32 %v1011, 4294901760
      %1457 = vmatpush.msra.mxu0 %v1456
      %v1458 = vand.u32 %v1010, 4294901760
      %1459 = vmatpush.msra.mxu0 %v1458
      %v1460 = vand.u32 %v1009, 4294901760
      %1461 = vmatpush.msra.mxu0 %v1460
      %v1462 = vand.u32 %v1008, 4294901760
      %1463 = vmatpush.msra.mxu0 %v1462
      %v1464 = vand.u32 %v1007, 4294901760
      %1465 = vmatpush.msra.mxu0 %v1464
      %v1466 = vand.u32 %v1006, 4294901760
      %1467 = vmatpush.msra.mxu0 %v1466
      %v1468 = vand.u32 %v1005, 4294901760
      %1469 = vmatpush.msra.mxu0 %v1468
      %v1470 = vand.u32 %v1004, 4294901760
      %1471 = vmatpush.msra.mxu0 %v1470
      %v1472 = vand.u32 %v1014, 4294901760
      %v1473 = vsub.f32 %v1014, %v1472
      %v1474 = vand.u32 %v1473, 4294901760
      %1475 = vmatmul.f32.gmra.mxu0 %v1474
      %v1476 = vpop.f32.mrf.mxu0
      %v1477 = vadd.f32 %v1371, %v1476
      %v1478 = vand.u32 %v1017, 4294901760
      %v1479 = vsub.f32 %v1017, %v1478
      %v1480 = vand.u32 %v1479, 4294901760
      %1481 = vmatmul.f32.gmra.mxu0 %v1480
      %v1482 = vpop.f32.mrf.mxu0
      %v1483 = vadd.f32 %v1376, %v1482
      %v1484 = vand.u32 %v1020, 4294901760
      %v1485 = vsub.f32 %v1020, %v1484
      %v1486 = vand.u32 %v1485, 4294901760
      %1487 = vmatmul.f32.gmra.mxu0 %v1486
      %v1488 = vpop.f32.mrf.mxu0
      %v1489 = vadd.f32 %v1381, %v1488
      %v1490 = vand.u32 %v1023, 4294901760
      %v1491 = vsub.f32 %v1023, %v1490
      %v1492 = vand.u32 %v1491, 4294901760
      %1493 = vmatmul.f32.gmra.mxu0 %v1492
      %v1494 = vpop.f32.mrf.mxu0
      %v1495 = vadd.f32 %v1386, %v1494
      %v1496 = vand.u32 %v1026, 4294901760
      %v1497 = vsub.f32 %v1026, %v1496
      %v1498 = vand.u32 %v1497, 4294901760
      %1499 = vmatmul.f32.gmra.mxu0 %v1498
      %v1500 = vpop.f32.mrf.mxu0
      %v1501 = vadd.f32 %v1391, %v1500
      %v1502 = vand.u32 %v1029, 4294901760
      %v1503 = vsub.f32 %v1029, %v1502
      %v1504 = vand.u32 %v1503, 4294901760
      %1505 = vmatmul.f32.gmra.mxu0 %v1504
      %v1506 = vpop.f32.mrf.mxu0
      %v1507 = vadd.f32 %v1396, %v1506
      %v1508 = vand.u32 %v1032, 4294901760
      %v1509 = vsub.f32 %v1032, %v1508
      %v1510 = vand.u32 %v1509, 4294901760
      %1511 = vmatmul.f32.gmra.mxu0 %v1510
      %v1512 = vpop.f32.mrf.mxu0
      %v1513 = vadd.f32 %v1401, %v1512
      %v1514 = vand.u32 %v1035, 4294901760
      %v1515 = vsub.f32 %v1035, %v1514
      %v1516 = vand.u32 %v1515, 4294901760
      %1517 = vmatmul.f32.gmra.mxu0 %v1516
      %v1518 = vpop.f32.mrf.mxu0
      %v1519 = vadd.f32 %v1406, %v1518
      %v1520 = vand.u32 %v1038, 4294901760
      %v1521 = vsub.f32 %v1038, %v1520
      %v1522 = vand.u32 %v1521, 4294901760
      %1523 = vmatmul.f32.gmra.mxu0 %v1522
      %v1524 = vpop.f32.mrf.mxu0
      %v1525 = vadd.f32 %v1411, %v1524
      %v1526 = vand.u32 %v1041, 4294901760
      %v1527 = vsub.f32 %v1041, %v1526
      %v1528 = vand.u32 %v1527, 4294901760
      %1529 = vmatmul.f32.gmra.mxu0 %v1528
      %v1530 = vpop.f32.mrf.mxu0
      %v1531 = vadd.f32 %v1416, %v1530
      %v1532 = vand.u32 %v1044, 4294901760
      %v1533 = vsub.f32 %v1044, %v1532
      %v1534 = vand.u32 %v1533, 4294901760
      %1535 = vmatmul.f32.gmra.mxu0 %v1534
      %v1536 = vpop.f32.mrf.mxu0
      %v1537 = vadd.f32 %v1421, %v1536
      %v1538 = vand.u32 %v1047, 4294901760
      %v1539 = vsub.f32 %v1047, %v1538
      %v1540 = vand.u32 %v1539, 4294901760
      %1541 = vmatmul.f32.gmra.mxu0 %v1540
      %v1542 = vpop.f32.mrf.mxu0
      %v1543 = vadd.f32 %v1426, %v1542
      %v1544 = vand.u32 %v1050, 4294901760
      %v1545 = vsub.f32 %v1050, %v1544
      %v1546 = vand.u32 %v1545, 4294901760
      %1547 = vmatmul.f32.gmra.mxu0 %v1546
      %v1548 = vpop.f32.mrf.mxu0
      %v1549 = vadd.f32 %v1431, %v1548
      %v1550 = vand.u32 %v1053, 4294901760
      %v1551 = vsub.f32 %v1053, %v1550
      %v1552 = vand.u32 %v1551, 4294901760
      %1553 = vmatmul.f32.gmra.mxu0 %v1552
      %v1554 = vpop.f32.mrf.mxu0
      %v1555 = vadd.f32 %v1436, %v1554
      %v1556 = vand.u32 %v1056, 4294901760
      %v1557 = vsub.f32 %v1056, %v1556
      %v1558 = vand.u32 %v1557, 4294901760
      %1559 = vmatmul.f32.gmra.mxu0 %v1558
      %v1560 = vpop.f32.mrf.mxu0
      %v1561 = vadd.f32 %v1441, %v1560
      %v1562 = vand.u32 %v1059, 4294901760
      %v1563 = vsub.f32 %v1059, %v1562
      %v1564 = vand.u32 %v1563, 4294901760
      %1565 = vmatmul.f32.gmra.mxu0 %v1564
      %v1566 = vpop.f32.mrf.mxu0
      %v1567 = vadd.f32 %v1446, %v1566
      %1568 = vdwg.mxu0
      %1569 = vmatpush.msra.mxu0 0.0
      %1570 = vmatpush.msra.mxu0 0.0
      %1571 = vmatpush.msra.mxu0 0.0
      %1572 = vmatpush.msra.mxu0 0.0
      %1573 = vmatpush.msra.mxu0 0.0
      %1574 = vmatpush.msra.mxu0 0.0
      %1575 = vmatpush.msra.mxu0 0.0
      %1576 = vmatpush.msra.mxu0 0.0
      %v1577 = vand.u32 %v1011, 4294901760
      %v1578 = vsub.f32 %v1011, %v1577
      %v1579 = vand.u32 %v1578, 4294901760
      %1580 = vmatpush.msra.mxu0 %v1579
      %v1581 = vand.u32 %v1010, 4294901760
      %v1582 = vsub.f32 %v1010, %v1581
      %v1583 = vand.u32 %v1582, 4294901760
      %1584 = vmatpush.msra.mxu0 %v1583
      %v1585 = vand.u32 %v1009, 4294901760
      %v1586 = vsub.f32 %v1009, %v1585
      %v1587 = vand.u32 %v1586, 4294901760
      %1588 = vmatpush.msra.mxu0 %v1587
      %v1589 = vand.u32 %v1008, 4294901760
      %v1590 = vsub.f32 %v1008, %v1589
      %v1591 = vand.u32 %v1590, 4294901760
      %1592 = vmatpush.msra.mxu0 %v1591
      %v1593 = vand.u32 %v1007, 4294901760
      %v1594 = vsub.f32 %v1007, %v1593
      %v1595 = vand.u32 %v1594, 4294901760
      %1596 = vmatpush.msra.mxu0 %v1595
      %v1597 = vand.u32 %v1006, 4294901760
      %v1598 = vsub.f32 %v1006, %v1597
      %v1599 = vand.u32 %v1598, 4294901760
      %1600 = vmatpush.msra.mxu0 %v1599
      %v1601 = vand.u32 %v1005, 4294901760
      %v1602 = vsub.f32 %v1005, %v1601
      %v1603 = vand.u32 %v1602, 4294901760
      %1604 = vmatpush.msra.mxu0 %v1603
      %v1605 = vand.u32 %v1004, 4294901760
      %v1606 = vsub.f32 %v1004, %v1605
      %v1607 = vand.u32 %v1606, 4294901760
      %1608 = vmatpush.msra.mxu0 %v1607
      %v1609 = vand.u32 %v1014, 4294901760
      %1610 = vmatmul.f32.gmra.mxu0 %v1609
      %v1611 = vpop.f32.mrf.mxu0
      %v1612 = vadd.f32 %v1477, %v1611
      %v1613 = vand.u32 %v1017, 4294901760
      %1614 = vmatmul.f32.gmra.mxu0 %v1613
      %v1615 = vpop.f32.mrf.mxu0
      %v1616 = vadd.f32 %v1483, %v1615
      %v1617 = vand.u32 %v1020, 4294901760
      %1618 = vmatmul.f32.gmra.mxu0 %v1617
      %v1619 = vpop.f32.mrf.mxu0
      %v1620 = vadd.f32 %v1489, %v1619
      %v1621 = vand.u32 %v1023, 4294901760
      %1622 = vmatmul.f32.gmra.mxu0 %v1621
      %v1623 = vpop.f32.mrf.mxu0
      %v1624 = vadd.f32 %v1495, %v1623
      %v1625 = vand.u32 %v1026, 4294901760
      %1626 = vmatmul.f32.gmra.mxu0 %v1625
      %v1627 = vpop.f32.mrf.mxu0
      %v1628 = vadd.f32 %v1501, %v1627
      %v1629 = vand.u32 %v1029, 4294901760
      %1630 = vmatmul.f32.gmra.mxu0 %v1629
      %v1631 = vpop.f32.mrf.mxu0
      %v1632 = vadd.f32 %v1507, %v1631
      %v1633 = vand.u32 %v1032, 4294901760
      %1634 = vmatmul.f32.gmra.mxu0 %v1633
      %v1635 = vpop.f32.mrf.mxu0
      %v1636 = vadd.f32 %v1513, %v1635
      %v1637 = vand.u32 %v1035, 4294901760
      %1638 = vmatmul.f32.gmra.mxu0 %v1637
      %v1639 = vpop.f32.mrf.mxu0
      %v1640 = vadd.f32 %v1519, %v1639
      %v1641 = vand.u32 %v1038, 4294901760
      %1642 = vmatmul.f32.gmra.mxu0 %v1641
      %v1643 = vpop.f32.mrf.mxu0
      %v1644 = vadd.f32 %v1525, %v1643
      %v1645 = vand.u32 %v1041, 4294901760
      %1646 = vmatmul.f32.gmra.mxu0 %v1645
      %v1647 = vpop.f32.mrf.mxu0
      %v1648 = vadd.f32 %v1531, %v1647
      %v1649 = vand.u32 %v1044, 4294901760
      %1650 = vmatmul.f32.gmra.mxu0 %v1649
      %v1651 = vpop.f32.mrf.mxu0
      %v1652 = vadd.f32 %v1537, %v1651
      %v1653 = vand.u32 %v1047, 4294901760
      %1654 = vmatmul.f32.gmra.mxu0 %v1653
      %v1655 = vpop.f32.mrf.mxu0
      %v1656 = vadd.f32 %v1543, %v1655
      %v1657 = vand.u32 %v1050, 4294901760
      %1658 = vmatmul.f32.gmra.mxu0 %v1657
      %v1659 = vpop.f32.mrf.mxu0
      %v1660 = vadd.f32 %v1549, %v1659
      %v1661 = vand.u32 %v1053, 4294901760
      %1662 = vmatmul.f32.gmra.mxu0 %v1661
      %v1663 = vpop.f32.mrf.mxu0
      %v1664 = vadd.f32 %v1555, %v1663
      %v1665 = vand.u32 %v1056, 4294901760
      %1666 = vmatmul.f32.gmra.mxu0 %v1665
      %v1667 = vpop.f32.mrf.mxu0
      %v1668 = vadd.f32 %v1561, %v1667
      %v1669 = vand.u32 %v1059, 4294901760
      %1670 = vmatmul.f32.gmra.mxu0 %v1669
      %v1671 = vpop.f32.mrf.mxu0
      %v1672 = vadd.f32 %v1567, %v1671
      %1673 = vdwg.mxu0
      %1674 = vmatpush.msra.mxu0 0.0
      %1675 = vmatpush.msra.mxu0 0.0
      %1676 = vmatpush.msra.mxu0 0.0
      %1677 = vmatpush.msra.mxu0 0.0
      %1678 = vmatpush.msra.mxu0 0.0
      %1679 = vmatpush.msra.mxu0 0.0
      %1680 = vmatpush.msra.mxu0 0.0
      %1681 = vmatpush.msra.mxu0 0.0
      %v1682 = vand.u32 %v1011, 4294901760
      %1683 = vmatpush.msra.mxu0 %v1682
      %v1684 = vand.u32 %v1010, 4294901760
      %1685 = vmatpush.msra.mxu0 %v1684
      %v1686 = vand.u32 %v1009, 4294901760
      %1687 = vmatpush.msra.mxu0 %v1686
      %v1688 = vand.u32 %v1008, 4294901760
      %1689 = vmatpush.msra.mxu0 %v1688
      %v1690 = vand.u32 %v1007, 4294901760
      %1691 = vmatpush.msra.mxu0 %v1690
      %v1692 = vand.u32 %v1006, 4294901760
      %1693 = vmatpush.msra.mxu0 %v1692
      %v1694 = vand.u32 %v1005, 4294901760
      %1695 = vmatpush.msra.mxu0 %v1694
      %v1696 = vand.u32 %v1004, 4294901760
      %1697 = vmatpush.msra.mxu0 %v1696
      %v1698 = vand.u32 %v1014, 4294901760
      %1699 = vmatmul.f32.gmra.mxu0 %v1698
      %v1700 = vpop.f32.mrf.mxu0
      %v1701 = vadd.f32 %v1612, %v1700
      %v1702 = vand.u32 %v1017, 4294901760
      %1703 = vmatmul.f32.gmra.mxu0 %v1702
      %v1704 = vpop.f32.mrf.mxu0
      %v1705 = vadd.f32 %v1616, %v1704
      %v1706 = vand.u32 %v1020, 4294901760
      %1707 = vmatmul.f32.gmra.mxu0 %v1706
      %v1708 = vpop.f32.mrf.mxu0
      %v1709 = vadd.f32 %v1620, %v1708
      %v1710 = vand.u32 %v1023, 4294901760
      %1711 = vmatmul.f32.gmra.mxu0 %v1710
      %v1712 = vpop.f32.mrf.mxu0
      %v1713 = vadd.f32 %v1624, %v1712
      %v1714 = vand.u32 %v1026, 4294901760
      %1715 = vmatmul.f32.gmra.mxu0 %v1714
      %v1716 = vpop.f32.mrf.mxu0
      %v1717 = vadd.f32 %v1628, %v1716
      %v1718 = vand.u32 %v1029, 4294901760
      %1719 = vmatmul.f32.gmra.mxu0 %v1718
      %v1720 = vpop.f32.mrf.mxu0
      %v1721 = vadd.f32 %v1632, %v1720
      %v1722 = vand.u32 %v1032, 4294901760
      %1723 = vmatmul.f32.gmra.mxu0 %v1722
      %v1724 = vpop.f32.mrf.mxu0
      %v1725 = vadd.f32 %v1636, %v1724
      %v1726 = vand.u32 %v1035, 4294901760
      %1727 = vmatmul.f32.gmra.mxu0 %v1726
      %v1728 = vpop.f32.mrf.mxu0
      %v1729 = vadd.f32 %v1640, %v1728
      %v1730 = vand.u32 %v1038, 4294901760
      %1731 = vmatmul.f32.gmra.mxu0 %v1730
      %v1732 = vpop.f32.mrf.mxu0
      %v1733 = vadd.f32 %v1644, %v1732
      %v1734 = vand.u32 %v1041, 4294901760
      %1735 = vmatmul.f32.gmra.mxu0 %v1734
      %v1736 = vpop.f32.mrf.mxu0
      %v1737 = vadd.f32 %v1648, %v1736
      %v1738 = vand.u32 %v1044, 4294901760
      %1739 = vmatmul.f32.gmra.mxu0 %v1738
      %v1740 = vpop.f32.mrf.mxu0
      %v1741 = vadd.f32 %v1652, %v1740
      %v1742 = vand.u32 %v1047, 4294901760
      %1743 = vmatmul.f32.gmra.mxu0 %v1742
      %v1744 = vpop.f32.mrf.mxu0
      %v1745 = vadd.f32 %v1656, %v1744
      %v1746 = vand.u32 %v1050, 4294901760
      %1747 = vmatmul.f32.gmra.mxu0 %v1746
      %v1748 = vpop.f32.mrf.mxu0
      %v1749 = vadd.f32 %v1660, %v1748
      %v1750 = vand.u32 %v1053, 4294901760
      %1751 = vmatmul.f32.gmra.mxu0 %v1750
      %v1752 = vpop.f32.mrf.mxu0
      %v1753 = vadd.f32 %v1664, %v1752
      %v1754 = vand.u32 %v1056, 4294901760
      %1755 = vmatmul.f32.gmra.mxu0 %v1754
      %v1756 = vpop.f32.mrf.mxu0
      %v1757 = vadd.f32 %v1668, %v1756
      %v1758 = vand.u32 %v1059, 4294901760
      %1759 = vmatmul.f32.gmra.mxu0 %v1758
      %v1760 = vpop.f32.mrf.mxu0
      %v1761 = vadd.f32 %v1672, %v1760
      %1762 = vdwg.mxu0
      %v1763 = vround.ne.pseudo %v1701
      %v1764 = vround.ne.pseudo %v1705
      %v1765 = vround.ne.pseudo %v1709
      %v1766 = vround.ne.pseudo %v1713
      %v1767 = vround.ne.pseudo %v1717
      %v1768 = vround.ne.pseudo %v1721
      %v1769 = vround.ne.pseudo %v1725
      %v1770 = vround.ne.pseudo %v1729
      %v1771 = vround.ne.pseudo %v1733
      %v1772 = vround.ne.pseudo %v1737
      %v1773 = vround.ne.pseudo %v1741
      %v1774 = vround.ne.pseudo %v1745
      %v1775 = vround.ne.pseudo %v1749
      %v1776 = vround.ne.pseudo %v1753
      %v1777 = vround.ne.pseudo %v1757
      %v1778 = vround.ne.pseudo %v1761
      %v1779 = vmax.f32 %v1763, 0.0
      %v1780 = vmax.f32 %v1764, 0.0
      %v1781 = vmax.f32 %v1765, 0.0
      %v1782 = vmax.f32 %v1766, 0.0
      %v1783 = vmax.f32 %v1767, 0.0
      %v1784 = vmax.f32 %v1768, 0.0
      %v1785 = vmax.f32 %v1769, 0.0
      %v1786 = vmax.f32 %v1770, 0.0
      %v1787 = vmax.f32 %v1771, 0.0
      %v1788 = vmax.f32 %v1772, 0.0
      %v1789 = vmax.f32 %v1773, 0.0
      %v1790 = vmax.f32 %v1774, 0.0
      %v1791 = vmax.f32 %v1775, 0.0
      %v1792 = vmax.f32 %v1776, 0.0
      %v1793 = vmax.f32 %v1777, 0.0
      %v1794 = vmax.f32 %v1778, 0.0
      %v1795 = vmin.f32 %v1779, 2047.0
      %v1796 = vmin.f32 %v1780, 2047.0
      %v1797 = vmin.f32 %v1781, 2047.0
      %v1798 = vmin.f32 %v1782, 2047.0
      %v1799 = vmin.f32 %v1783, 2047.0
      %v1800 = vmin.f32 %v1784, 2047.0
      %v1801 = vmin.f32 %v1785, 2047.0
      %v1802 = vmin.f32 %v1786, 2047.0
      %v1803 = vmin.f32 %v1787, 2047.0
      %v1804 = vmin.f32 %v1788, 2047.0
      %v1805 = vmin.f32 %v1789, 2047.0
      %v1806 = vmin.f32 %v1790, 2047.0
      %v1807 = vmin.f32 %v1791, 2047.0
      %v1808 = vmin.f32 %v1792, 2047.0
      %v1809 = vmin.f32 %v1793, 2047.0
      %v1810 = vmin.f32 %v1794, 2047.0
      %v1811 = vld [vmem:[%s3] sm:$0xff]
      %v1812 = vld [vmem:[%s3 + $0x8] sm:$0xff]
      %v1813 = vld [vmem:[%s3 + $0x10] sm:$0xff]
      %v1814 = vld [vmem:[%s3 + $0x18] sm:$0xff]
      %v1815 = vld [vmem:[%s3 + $0x20] sm:$0xff]
      %v1816 = vld [vmem:[%s3 + $0x28] sm:$0xff]
      %v1817 = vld [vmem:[%s3 + $0x30] sm:$0xff]
      %v1818 = vld [vmem:[%s3 + $0x38] sm:$0xff]
      %v1820 = vsel %vm1012, %v1795, 0
      %v1823 = vsel %vm1012, %v1796, 0
      %v1826 = vsel %vm1012, %v1797, 0
      %v1829 = vsel %vm1012, %v1798, 0
      %v1832 = vsel %vm1012, %v1799, 0
      %v1835 = vsel %vm1012, %v1800, 0
      %v1838 = vsel %vm1012, %v1801, 0
      %v1841 = vsel %vm1012, %v1802, 0
      %v1844 = vsel %vm1012, %v1803, 0
      %v1847 = vsel %vm1012, %v1804, 0
      %v1850 = vsel %vm1012, %v1805, 0
      %v1853 = vsel %vm1012, %v1806, 0
      %v1856 = vsel %vm1012, %v1807, 0
      %v1859 = vsel %vm1012, %v1808, 0
      %v1862 = vsel %vm1012, %v1809, 0
      %v1865 = vsel %vm1012, %v1810, 0
      %1867 = vmatpush.msra.mxu0 0.0
      %1868 = vmatpush.msra.mxu0 0.0
      %1869 = vmatpush.msra.mxu0 0.0
      %1870 = vmatpush.msra.mxu0 0.0
      %1871 = vmatpush.msra.mxu0 0.0
      %1872 = vmatpush.msra.mxu0 0.0
      %1873 = vmatpush.msra.mxu0 0.0
      %1874 = vmatpush.msra.mxu0 0.0
      %v1875 = vand.u32 %v1818, 4294901760
      %1876 = vmatpush.msra.mxu0 %v1875
      %v1877 = vand.u32 %v1817, 4294901760
      %1878 = vmatpush.msra.mxu0 %v1877
      %v1879 = vand.u32 %v1816, 4294901760
      %1880 = vmatpush.msra.mxu0 %v1879
      %v1881 = vand.u32 %v1815, 4294901760
      %1882 = vmatpush.msra.mxu0 %v1881
      %v1883 = vand.u32 %v1814, 4294901760
      %1884 = vmatpush.msra.mxu0 %v1883
      %v1885 = vand.u32 %v1813, 4294901760
      %1886 = vmatpush.msra.mxu0 %v1885
      %v1887 = vand.u32 %v1812, 4294901760
      %1888 = vmatpush.msra.mxu0 %v1887
      %v1889 = vand.u32 %v1811, 4294901760
      %1890 = vmatpush.msra.mxu0 %v1889
      %v1891 = vand.u32 %v1820, 4294901760
      %v1892 = vsub.f32 %v1820, %v1891
      %v1893 = vand.u32 %v1892, 4294901760
      %v1894 = vsub.f32 %v1892, %v1893
      %v1895 = vand.u32 %v1894, 4294901760
      %1896 = vmatmul.f32.gmra.mxu0 %v1895
      %v1897 = vpop.f32.mrf.mxu0
      %v1898 = vadd.f32 0.0, %v1897
      %v1899 = vand.u32 %v1823, 4294901760
      %v1900 = vsub.f32 %v1823, %v1899
      %v1901 = vand.u32 %v1900, 4294901760
      %v1902 = vsub.f32 %v1900, %v1901
      %v1903 = vand.u32 %v1902, 4294901760
      %1904 = vmatmul.f32.gmra.mxu0 %v1903
      %v1905 = vpop.f32.mrf.mxu0
      %v1906 = vadd.f32 0.0, %v1905
      %v1907 = vand.u32 %v1826, 4294901760
      %v1908 = vsub.f32 %v1826, %v1907
      %v1909 = vand.u32 %v1908, 4294901760
      %v1910 = vsub.f32 %v1908, %v1909
      %v1911 = vand.u32 %v1910, 4294901760
      %1912 = vmatmul.f32.gmra.mxu0 %v1911
      %v1913 = vpop.f32.mrf.mxu0
      %v1914 = vadd.f32 0.0, %v1913
      %v1915 = vand.u32 %v1829, 4294901760
      %v1916 = vsub.f32 %v1829, %v1915
      %v1917 = vand.u32 %v1916, 4294901760
      %v1918 = vsub.f32 %v1916, %v1917
      %v1919 = vand.u32 %v1918, 4294901760
      %1920 = vmatmul.f32.gmra.mxu0 %v1919
      %v1921 = vpop.f32.mrf.mxu0
      %v1922 = vadd.f32 0.0, %v1921
      %v1923 = vand.u32 %v1832, 4294901760
      %v1924 = vsub.f32 %v1832, %v1923
      %v1925 = vand.u32 %v1924, 4294901760
      %v1926 = vsub.f32 %v1924, %v1925
      %v1927 = vand.u32 %v1926, 4294901760
      %1928 = vmatmul.f32.gmra.mxu0 %v1927
      %v1929 = vpop.f32.mrf.mxu0
      %v1930 = vadd.f32 0.0, %v1929
      %v1931 = vand.u32 %v1835, 4294901760
      %v1932 = vsub.f32 %v1835, %v1931
      %v1933 = vand.u32 %v1932, 4294901760
      %v1934 = vsub.f32 %v1932, %v1933
      %v1935 = vand.u32 %v1934, 4294901760
      %1936 = vmatmul.f32.gmra.mxu0 %v1935
      %v1937 = vpop.f32.mrf.mxu0
      %v1938 = vadd.f32 0.0, %v1937
      %v1939 = vand.u32 %v1838, 4294901760
      %v1940 = vsub.f32 %v1838, %v1939
      %v1941 = vand.u32 %v1940, 4294901760
      %v1942 = vsub.f32 %v1940, %v1941
      %v1943 = vand.u32 %v1942, 4294901760
      %1944 = vmatmul.f32.gmra.mxu0 %v1943
      %v1945 = vpop.f32.mrf.mxu0
      %v1946 = vadd.f32 0.0, %v1945
      %v1947 = vand.u32 %v1841, 4294901760
      %v1948 = vsub.f32 %v1841, %v1947
      %v1949 = vand.u32 %v1948, 4294901760
      %v1950 = vsub.f32 %v1948, %v1949
      %v1951 = vand.u32 %v1950, 4294901760
      %1952 = vmatmul.f32.gmra.mxu0 %v1951
      %v1953 = vpop.f32.mrf.mxu0
      %v1954 = vadd.f32 0.0, %v1953
      %v1955 = vand.u32 %v1844, 4294901760
      %v1956 = vsub.f32 %v1844, %v1955
      %v1957 = vand.u32 %v1956, 4294901760
      %v1958 = vsub.f32 %v1956, %v1957
      %v1959 = vand.u32 %v1958, 4294901760
      %1960 = vmatmul.f32.gmra.mxu0 %v1959
      %v1961 = vpop.f32.mrf.mxu0
      %v1962 = vadd.f32 0.0, %v1961
      %v1963 = vand.u32 %v1847, 4294901760
      %v1964 = vsub.f32 %v1847, %v1963
      %v1965 = vand.u32 %v1964, 4294901760
      %v1966 = vsub.f32 %v1964, %v1965
      %v1967 = vand.u32 %v1966, 4294901760
      %1968 = vmatmul.f32.gmra.mxu0 %v1967
      %v1969 = vpop.f32.mrf.mxu0
      %v1970 = vadd.f32 0.0, %v1969
      %v1971 = vand.u32 %v1850, 4294901760
      %v1972 = vsub.f32 %v1850, %v1971
      %v1973 = vand.u32 %v1972, 4294901760
      %v1974 = vsub.f32 %v1972, %v1973
      %v1975 = vand.u32 %v1974, 4294901760
      %1976 = vmatmul.f32.gmra.mxu0 %v1975
      %v1977 = vpop.f32.mrf.mxu0
      %v1978 = vadd.f32 0.0, %v1977
      %v1979 = vand.u32 %v1853, 4294901760
      %v1980 = vsub.f32 %v1853, %v1979
      %v1981 = vand.u32 %v1980, 4294901760
      %v1982 = vsub.f32 %v1980, %v1981
      %v1983 = vand.u32 %v1982, 4294901760
      %1984 = vmatmul.f32.gmra.mxu0 %v1983
      %v1985 = vpop.f32.mrf.mxu0
      %v1986 = vadd.f32 0.0, %v1985
      %v1987 = vand.u32 %v1856, 4294901760
      %v1988 = vsub.f32 %v1856, %v1987
      %v1989 = vand.u32 %v1988, 4294901760
      %v1990 = vsub.f32 %v1988, %v1989
      %v1991 = vand.u32 %v1990, 4294901760
      %1992 = vmatmul.f32.gmra.mxu0 %v1991
      %v1993 = vpop.f32.mrf.mxu0
      %v1994 = vadd.f32 0.0, %v1993
      %v1995 = vand.u32 %v1859, 4294901760
      %v1996 = vsub.f32 %v1859, %v1995
      %v1997 = vand.u32 %v1996, 4294901760
      %v1998 = vsub.f32 %v1996, %v1997
      %v1999 = vand.u32 %v1998, 4294901760
      %2000 = vmatmul.f32.gmra.mxu0 %v1999
      %v2001 = vpop.f32.mrf.mxu0
      %v2002 = vadd.f32 0.0, %v2001
      %v2003 = vand.u32 %v1862, 4294901760
      %v2004 = vsub.f32 %v1862, %v2003
      %v2005 = vand.u32 %v2004, 4294901760
      %v2006 = vsub.f32 %v2004, %v2005
      %v2007 = vand.u32 %v2006, 4294901760
      %2008 = vmatmul.f32.gmra.mxu0 %v2007
      %v2009 = vpop.f32.mrf.mxu0
      %v2010 = vadd.f32 0.0, %v2009
      %v2011 = vand.u32 %v1865, 4294901760
      %v2012 = vsub.f32 %v1865, %v2011
      %v2013 = vand.u32 %v2012, 4294901760
      %v2014 = vsub.f32 %v2012, %v2013
      %v2015 = vand.u32 %v2014, 4294901760
      %2016 = vmatmul.f32.gmra.mxu0 %v2015
      %v2017 = vpop.f32.mrf.mxu0
      %v2018 = vadd.f32 0.0, %v2017
      %2019 = vdwg.mxu0
      %2020 = vmatpush.msra.mxu0 0.0
      %2021 = vmatpush.msra.mxu0 0.0
      %2022 = vmatpush.msra.mxu0 0.0
      %2023 = vmatpush.msra.mxu0 0.0
      %2024 = vmatpush.msra.mxu0 0.0
      %2025 = vmatpush.msra.mxu0 0.0
      %2026 = vmatpush.msra.mxu0 0.0
      %2027 = vmatpush.msra.mxu0 0.0
      %v2028 = vand.u32 %v1818, 4294901760
      %v2029 = vsub.f32 %v1818, %v2028
      %v2030 = vand.u32 %v2029, 4294901760
      %v2031 = vsub.f32 %v2029, %v2030
      %v2032 = vand.u32 %v2031, 4294901760
      %2033 = vmatpush.msra.mxu0 %v2032
      %v2034 = vand.u32 %v1817, 4294901760
      %v2035 = vsub.f32 %v1817, %v2034
      %v2036 = vand.u32 %v2035, 4294901760
      %v2037 = vsub.f32 %v2035, %v2036
      %v2038 = vand.u32 %v2037, 4294901760
      %2039 = vmatpush.msra.mxu0 %v2038
      %v2040 = vand.u32 %v1816, 4294901760
      %v2041 = vsub.f32 %v1816, %v2040
      %v2042 = vand.u32 %v2041, 4294901760
      %v2043 = vsub.f32 %v2041, %v2042
      %v2044 = vand.u32 %v2043, 4294901760
      %2045 = vmatpush.msra.mxu0 %v2044
      %v2046 = vand.u32 %v1815, 4294901760
      %v2047 = vsub.f32 %v1815, %v2046
      %v2048 = vand.u32 %v2047, 4294901760
      %v2049 = vsub.f32 %v2047, %v2048
      %v2050 = vand.u32 %v2049, 4294901760
      %2051 = vmatpush.msra.mxu0 %v2050
      %v2052 = vand.u32 %v1814, 4294901760
      %v2053 = vsub.f32 %v1814, %v2052
      %v2054 = vand.u32 %v2053, 4294901760
      %v2055 = vsub.f32 %v2053, %v2054
      %v2056 = vand.u32 %v2055, 4294901760
      %2057 = vmatpush.msra.mxu0 %v2056
      %v2058 = vand.u32 %v1813, 4294901760
      %v2059 = vsub.f32 %v1813, %v2058
      %v2060 = vand.u32 %v2059, 4294901760
      %v2061 = vsub.f32 %v2059, %v2060
      %v2062 = vand.u32 %v2061, 4294901760
      %2063 = vmatpush.msra.mxu0 %v2062
      %v2064 = vand.u32 %v1812, 4294901760
      %v2065 = vsub.f32 %v1812, %v2064
      %v2066 = vand.u32 %v2065, 4294901760
      %v2067 = vsub.f32 %v2065, %v2066
      %v2068 = vand.u32 %v2067, 4294901760
      %2069 = vmatpush.msra.mxu0 %v2068
      %v2070 = vand.u32 %v1811, 4294901760
      %v2071 = vsub.f32 %v1811, %v2070
      %v2072 = vand.u32 %v2071, 4294901760
      %v2073 = vsub.f32 %v2071, %v2072
      %v2074 = vand.u32 %v2073, 4294901760
      %2075 = vmatpush.msra.mxu0 %v2074
      %v2076 = vand.u32 %v1820, 4294901760
      %2077 = vmatmul.f32.gmra.mxu0 %v2076
      %v2078 = vpop.f32.mrf.mxu0
      %v2079 = vadd.f32 %v1898, %v2078
      %v2080 = vand.u32 %v1823, 4294901760
      %2081 = vmatmul.f32.gmra.mxu0 %v2080
      %v2082 = vpop.f32.mrf.mxu0
      %v2083 = vadd.f32 %v1906, %v2082
      %v2084 = vand.u32 %v1826, 4294901760
      %2085 = vmatmul.f32.gmra.mxu0 %v2084
      %v2086 = vpop.f32.mrf.mxu0
      %v2087 = vadd.f32 %v1914, %v2086
      %v2088 = vand.u32 %v1829, 4294901760
      %2089 = vmatmul.f32.gmra.mxu0 %v2088
      %v2090 = vpop.f32.mrf.mxu0
      %v2091 = vadd.f32 %v1922, %v2090
      %v2092 = vand.u32 %v1832, 4294901760
      %2093 = vmatmul.f32.gmra.mxu0 %v2092
      %v2094 = vpop.f32.mrf.mxu0
      %v2095 = vadd.f32 %v1930, %v2094
      %v2096 = vand.u32 %v1835, 4294901760
      %2097 = vmatmul.f32.gmra.mxu0 %v2096
      %v2098 = vpop.f32.mrf.mxu0
      %v2099 = vadd.f32 %v1938, %v2098
      %v2100 = vand.u32 %v1838, 4294901760
      %2101 = vmatmul.f32.gmra.mxu0 %v2100
      %v2102 = vpop.f32.mrf.mxu0
      %v2103 = vadd.f32 %v1946, %v2102
      %v2104 = vand.u32 %v1841, 4294901760
      %2105 = vmatmul.f32.gmra.mxu0 %v2104
      %v2106 = vpop.f32.mrf.mxu0
      %v2107 = vadd.f32 %v1954, %v2106
      %v2108 = vand.u32 %v1844, 4294901760
      %2109 = vmatmul.f32.gmra.mxu0 %v2108
      %v2110 = vpop.f32.mrf.mxu0
      %v2111 = vadd.f32 %v1962, %v2110
      %v2112 = vand.u32 %v1847, 4294901760
      %2113 = vmatmul.f32.gmra.mxu0 %v2112
      %v2114 = vpop.f32.mrf.mxu0
      %v2115 = vadd.f32 %v1970, %v2114
      %v2116 = vand.u32 %v1850, 4294901760
      %2117 = vmatmul.f32.gmra.mxu0 %v2116
      %v2118 = vpop.f32.mrf.mxu0
      %v2119 = vadd.f32 %v1978, %v2118
      %v2120 = vand.u32 %v1853, 4294901760
      %2121 = vmatmul.f32.gmra.mxu0 %v2120
      %v2122 = vpop.f32.mrf.mxu0
      %v2123 = vadd.f32 %v1986, %v2122
      %v2124 = vand.u32 %v1856, 4294901760
      %2125 = vmatmul.f32.gmra.mxu0 %v2124
      %v2126 = vpop.f32.mrf.mxu0
      %v2127 = vadd.f32 %v1994, %v2126
      %v2128 = vand.u32 %v1859, 4294901760
      %2129 = vmatmul.f32.gmra.mxu0 %v2128
      %v2130 = vpop.f32.mrf.mxu0
      %v2131 = vadd.f32 %v2002, %v2130
      %v2132 = vand.u32 %v1862, 4294901760
      %2133 = vmatmul.f32.gmra.mxu0 %v2132
      %v2134 = vpop.f32.mrf.mxu0
      %v2135 = vadd.f32 %v2010, %v2134
      %v2136 = vand.u32 %v1865, 4294901760
      %2137 = vmatmul.f32.gmra.mxu0 %v2136
      %v2138 = vpop.f32.mrf.mxu0
      %v2139 = vadd.f32 %v2018, %v2138
      %2140 = vdwg.mxu0
      %2141 = vmatpush.msra.mxu0 0.0
      %2142 = vmatpush.msra.mxu0 0.0
      %2143 = vmatpush.msra.mxu0 0.0
      %2144 = vmatpush.msra.mxu0 0.0
      %2145 = vmatpush.msra.mxu0 0.0
      %2146 = vmatpush.msra.mxu0 0.0
      %2147 = vmatpush.msra.mxu0 0.0
      %2148 = vmatpush.msra.mxu0 0.0
      %v2149 = vand.u32 %v1818, 4294901760
      %v2150 = vsub.f32 %v1818, %v2149
      %2151 = vmatpush.msra.mxu0 %v2150
      %v2152 = vand.u32 %v1817, 4294901760
      %v2153 = vsub.f32 %v1817, %v2152
      %2154 = vmatpush.msra.mxu0 %v2153
      %v2155 = vand.u32 %v1816, 4294901760
      %v2156 = vsub.f32 %v1816, %v2155
      %2157 = vmatpush.msra.mxu0 %v2156
      %v2158 = vand.u32 %v1815, 4294901760
      %v2159 = vsub.f32 %v1815, %v2158
      %2160 = vmatpush.msra.mxu0 %v2159
      %v2161 = vand.u32 %v1814, 4294901760
      %v2162 = vsub.f32 %v1814, %v2161
      %2163 = vmatpush.msra.mxu0 %v2162
      %v2164 = vand.u32 %v1813, 4294901760
      %v2165 = vsub.f32 %v1813, %v2164
      %2166 = vmatpush.msra.mxu0 %v2165
      %v2167 = vand.u32 %v1812, 4294901760
      %v2168 = vsub.f32 %v1812, %v2167
      %2169 = vmatpush.msra.mxu0 %v2168
      %v2170 = vand.u32 %v1811, 4294901760
      %v2171 = vsub.f32 %v1811, %v2170
      %2172 = vmatpush.msra.mxu0 %v2171
      %v2173 = vand.u32 %v1820, 4294901760
      %v2174 = vsub.f32 %v1820, %v2173
      %2175 = vmatmul.f32.gmra.mxu0 %v2174
      %v2176 = vpop.f32.mrf.mxu0
      %v2177 = vadd.f32 %v2079, %v2176
      %v2178 = vand.u32 %v1823, 4294901760
      %v2179 = vsub.f32 %v1823, %v2178
      %2180 = vmatmul.f32.gmra.mxu0 %v2179
      %v2181 = vpop.f32.mrf.mxu0
      %v2182 = vadd.f32 %v2083, %v2181
      %v2183 = vand.u32 %v1826, 4294901760
      %v2184 = vsub.f32 %v1826, %v2183
      %2185 = vmatmul.f32.gmra.mxu0 %v2184
      %v2186 = vpop.f32.mrf.mxu0
      %v2187 = vadd.f32 %v2087, %v2186
      %v2188 = vand.u32 %v1829, 4294901760
      %v2189 = vsub.f32 %v1829, %v2188
      %2190 = vmatmul.f32.gmra.mxu0 %v2189
      %v2191 = vpop.f32.mrf.mxu0
      %v2192 = vadd.f32 %v2091, %v2191
      %v2193 = vand.u32 %v1832, 4294901760
      %v2194 = vsub.f32 %v1832, %v2193
      %2195 = vmatmul.f32.gmra.mxu0 %v2194
      %v2196 = vpop.f32.mrf.mxu0
      %v2197 = vadd.f32 %v2095, %v2196
      %v2198 = vand.u32 %v1835, 4294901760
      %v2199 = vsub.f32 %v1835, %v2198
      %2200 = vmatmul.f32.gmra.mxu0 %v2199
      %v2201 = vpop.f32.mrf.mxu0
      %v2202 = vadd.f32 %v2099, %v2201
      %v2203 = vand.u32 %v1838, 4294901760
      %v2204 = vsub.f32 %v1838, %v2203
      %2205 = vmatmul.f32.gmra.mxu0 %v2204
      %v2206 = vpop.f32.mrf.mxu0
      %v2207 = vadd.f32 %v2103, %v2206
      %v2208 = vand.u32 %v1841, 4294901760
      %v2209 = vsub.f32 %v1841, %v2208
      %2210 = vmatmul.f32.gmra.mxu0 %v2209
      %v2211 = vpop.f32.mrf.mxu0
      %v2212 = vadd.f32 %v2107, %v2211
      %v2213 = vand.u32 %v1844, 4294901760
      %v2214 = vsub.f32 %v1844, %v2213
      %2215 = vmatmul.f32.gmra.mxu0 %v2214
      %v2216 = vpop.f32.mrf.mxu0
      %v2217 = vadd.f32 %v2111, %v2216
      %v2218 = vand.u32 %v1847, 4294901760
      %v2219 = vsub.f32 %v1847, %v2218
      %2220 = vmatmul.f32.gmra.mxu0 %v2219
      %v2221 = vpop.f32.mrf.mxu0
      %v2222 = vadd.f32 %v2115, %v2221
      %v2223 = vand.u32 %v1850, 4294901760
      %v2224 = vsub.f32 %v1850, %v2223
      %2225 = vmatmul.f32.gmra.mxu0 %v2224
      %v2226 = vpop.f32.mrf.mxu0
      %v2227 = vadd.f32 %v2119, %v2226
      %v2228 = vand.u32 %v1853, 4294901760
      %v2229 = vsub.f32 %v1853, %v2228
      %2230 = vmatmul.f32.gmra.mxu0 %v2229
      %v2231 = vpop.f32.mrf.mxu0
      %v2232 = vadd.f32 %v2123, %v2231
      %v2233 = vand.u32 %v1856, 4294901760
      %v2234 = vsub.f32 %v1856, %v2233
      %2235 = vmatmul.f32.gmra.mxu0 %v2234
      %v2236 = vpop.f32.mrf.mxu0
      %v2237 = vadd.f32 %v2127, %v2236
      %v2238 = vand.u32 %v1859, 4294901760
      %v2239 = vsub.f32 %v1859, %v2238
      %2240 = vmatmul.f32.gmra.mxu0 %v2239
      %v2241 = vpop.f32.mrf.mxu0
      %v2242 = vadd.f32 %v2131, %v2241
      %v2243 = vand.u32 %v1862, 4294901760
      %v2244 = vsub.f32 %v1862, %v2243
      %2245 = vmatmul.f32.gmra.mxu0 %v2244
      %v2246 = vpop.f32.mrf.mxu0
      %v2247 = vadd.f32 %v2135, %v2246
      %v2248 = vand.u32 %v1865, 4294901760
      %v2249 = vsub.f32 %v1865, %v2248
      %2250 = vmatmul.f32.gmra.mxu0 %v2249
      %v2251 = vpop.f32.mrf.mxu0
      %v2252 = vadd.f32 %v2139, %v2251
      %2253 = vdwg.mxu0
      %2254 = vmatpush.msra.mxu0 0.0
      %2255 = vmatpush.msra.mxu0 0.0
      %2256 = vmatpush.msra.mxu0 0.0
      %2257 = vmatpush.msra.mxu0 0.0
      %2258 = vmatpush.msra.mxu0 0.0
      %2259 = vmatpush.msra.mxu0 0.0
      %2260 = vmatpush.msra.mxu0 0.0
      %2261 = vmatpush.msra.mxu0 0.0
      %v2262 = vand.u32 %v1818, 4294901760
      %2263 = vmatpush.msra.mxu0 %v2262
      %v2264 = vand.u32 %v1817, 4294901760
      %2265 = vmatpush.msra.mxu0 %v2264
      %v2266 = vand.u32 %v1816, 4294901760
      %2267 = vmatpush.msra.mxu0 %v2266
      %v2268 = vand.u32 %v1815, 4294901760
      %2269 = vmatpush.msra.mxu0 %v2268
      %v2270 = vand.u32 %v1814, 4294901760
      %2271 = vmatpush.msra.mxu0 %v2270
      %v2272 = vand.u32 %v1813, 4294901760
      %2273 = vmatpush.msra.mxu0 %v2272
      %v2274 = vand.u32 %v1812, 4294901760
      %2275 = vmatpush.msra.mxu0 %v2274
      %v2276 = vand.u32 %v1811, 4294901760
      %2277 = vmatpush.msra.mxu0 %v2276
      %v2278 = vand.u32 %v1820, 4294901760
      %v2279 = vsub.f32 %v1820, %v2278
      %v2280 = vand.u32 %v2279, 4294901760
      %2281 = vmatmul.f32.gmra.mxu0 %v2280
      %v2282 = vpop.f32.mrf.mxu0
      %v2283 = vadd.f32 %v2177, %v2282
      %v2284 = vand.u32 %v1823, 4294901760
      %v2285 = vsub.f32 %v1823, %v2284
      %v2286 = vand.u32 %v2285, 4294901760
      %2287 = vmatmul.f32.gmra.mxu0 %v2286
      %v2288 = vpop.f32.mrf.mxu0
      %v2289 = vadd.f32 %v2182, %v2288
      %v2290 = vand.u32 %v1826, 4294901760
      %v2291 = vsub.f32 %v1826, %v2290
      %v2292 = vand.u32 %v2291, 4294901760
      %2293 = vmatmul.f32.gmra.mxu0 %v2292
      %v2294 = vpop.f32.mrf.mxu0
      %v2295 = vadd.f32 %v2187, %v2294
      %v2296 = vand.u32 %v1829, 4294901760
      %v2297 = vsub.f32 %v1829, %v2296
      %v2298 = vand.u32 %v2297, 4294901760
      %2299 = vmatmul.f32.gmra.mxu0 %v2298
      %v2300 = vpop.f32.mrf.mxu0
      %v2301 = vadd.f32 %v2192, %v2300
      %v2302 = vand.u32 %v1832, 4294901760
      %v2303 = vsub.f32 %v1832, %v2302
      %v2304 = vand.u32 %v2303, 4294901760
      %2305 = vmatmul.f32.gmra.mxu0 %v2304
      %v2306 = vpop.f32.mrf.mxu0
      %v2307 = vadd.f32 %v2197, %v2306
      %v2308 = vand.u32 %v1835, 4294901760
      %v2309 = vsub.f32 %v1835, %v2308
      %v2310 = vand.u32 %v2309, 4294901760
      %2311 = vmatmul.f32.gmra.mxu0 %v2310
      %v2312 = vpop.f32.mrf.mxu0
      %v2313 = vadd.f32 %v2202, %v2312
      %v2314 = vand.u32 %v1838, 4294901760
      %v2315 = vsub.f32 %v1838, %v2314
      %v2316 = vand.u32 %v2315, 4294901760
      %2317 = vmatmul.f32.gmra.mxu0 %v2316
      %v2318 = vpop.f32.mrf.mxu0
      %v2319 = vadd.f32 %v2207, %v2318
      %v2320 = vand.u32 %v1841, 4294901760
      %v2321 = vsub.f32 %v1841, %v2320
      %v2322 = vand.u32 %v2321, 4294901760
      %2323 = vmatmul.f32.gmra.mxu0 %v2322
      %v2324 = vpop.f32.mrf.mxu0
      %v2325 = vadd.f32 %v2212, %v2324
      %v2326 = vand.u32 %v1844, 4294901760
      %v2327 = vsub.f32 %v1844, %v2326
      %v2328 = vand.u32 %v2327, 4294901760
      %2329 = vmatmul.f32.gmra.mxu0 %v2328
      %v2330 = vpop.f32.mrf.mxu0
      %v2331 = vadd.f32 %v2217, %v2330
      %v2332 = vand.u32 %v1847, 4294901760
      %v2333 = vsub.f32 %v1847, %v2332
      %v2334 = vand.u32 %v2333, 4294901760
      %2335 = vmatmul.f32.gmra.mxu0 %v2334
      %v2336 = vpop.f32.mrf.mxu0
      %v2337 = vadd.f32 %v2222, %v2336
      %v2338 = vand.u32 %v1850, 4294901760
      %v2339 = vsub.f32 %v1850, %v2338
      %v2340 = vand.u32 %v2339, 4294901760
      %2341 = vmatmul.f32.gmra.mxu0 %v2340
      %v2342 = vpop.f32.mrf.mxu0
      %v2343 = vadd.f32 %v2227, %v2342
      %v2344 = vand.u32 %v1853, 4294901760
      %v2345 = vsub.f32 %v1853, %v2344
      %v2346 = vand.u32 %v2345, 4294901760
      %2347 = vmatmul.f32.gmra.mxu0 %v2346
      %v2348 = vpop.f32.mrf.mxu0
      %v2349 = vadd.f32 %v2232, %v2348
      %v2350 = vand.u32 %v1856, 4294901760
      %v2351 = vsub.f32 %v1856, %v2350
      %v2352 = vand.u32 %v2351, 4294901760
      %2353 = vmatmul.f32.gmra.mxu0 %v2352
      %v2354 = vpop.f32.mrf.mxu0
      %v2355 = vadd.f32 %v2237, %v2354
      %v2356 = vand.u32 %v1859, 4294901760
      %v2357 = vsub.f32 %v1859, %v2356
      %v2358 = vand.u32 %v2357, 4294901760
      %2359 = vmatmul.f32.gmra.mxu0 %v2358
      %v2360 = vpop.f32.mrf.mxu0
      %v2361 = vadd.f32 %v2242, %v2360
      %v2362 = vand.u32 %v1862, 4294901760
      %v2363 = vsub.f32 %v1862, %v2362
      %v2364 = vand.u32 %v2363, 4294901760
      %2365 = vmatmul.f32.gmra.mxu0 %v2364
      %v2366 = vpop.f32.mrf.mxu0
      %v2367 = vadd.f32 %v2247, %v2366
      %v2368 = vand.u32 %v1865, 4294901760
      %v2369 = vsub.f32 %v1865, %v2368
      %v2370 = vand.u32 %v2369, 4294901760
      %2371 = vmatmul.f32.gmra.mxu0 %v2370
      %v2372 = vpop.f32.mrf.mxu0
      %v2373 = vadd.f32 %v2252, %v2372
      %2374 = vdwg.mxu0
      %2375 = vmatpush.msra.mxu0 0.0
      %2376 = vmatpush.msra.mxu0 0.0
      %2377 = vmatpush.msra.mxu0 0.0
      %2378 = vmatpush.msra.mxu0 0.0
      %2379 = vmatpush.msra.mxu0 0.0
      %2380 = vmatpush.msra.mxu0 0.0
      %2381 = vmatpush.msra.mxu0 0.0
      %2382 = vmatpush.msra.mxu0 0.0
      %v2383 = vand.u32 %v1818, 4294901760
      %v2384 = vsub.f32 %v1818, %v2383
      %v2385 = vand.u32 %v2384, 4294901760
      %2386 = vmatpush.msra.mxu0 %v2385
      %v2387 = vand.u32 %v1817, 4294901760
      %v2388 = vsub.f32 %v1817, %v2387
      %v2389 = vand.u32 %v2388, 4294901760
      %2390 = vmatpush.msra.mxu0 %v2389
      %v2391 = vand.u32 %v1816, 4294901760
      %v2392 = vsub.f32 %v1816, %v2391
      %v2393 = vand.u32 %v2392, 4294901760
      %2394 = vmatpush.msra.mxu0 %v2393
      %v2395 = vand.u32 %v1815, 4294901760
      %v2396 = vsub.f32 %v1815, %v2395
      %v2397 = vand.u32 %v2396, 4294901760
      %2398 = vmatpush.msra.mxu0 %v2397
      %v2399 = vand.u32 %v1814, 4294901760
      %v2400 = vsub.f32 %v1814, %v2399
      %v2401 = vand.u32 %v2400, 4294901760
      %2402 = vmatpush.msra.mxu0 %v2401
      %v2403 = vand.u32 %v1813, 4294901760
      %v2404 = vsub.f32 %v1813, %v2403
      %v2405 = vand.u32 %v2404, 4294901760
      %2406 = vmatpush.msra.mxu0 %v2405
      %v2407 = vand.u32 %v1812, 4294901760
      %v2408 = vsub.f32 %v1812, %v2407
      %v2409 = vand.u32 %v2408, 4294901760
      %2410 = vmatpush.msra.mxu0 %v2409
      %v2411 = vand.u32 %v1811, 4294901760
      %v2412 = vsub.f32 %v1811, %v2411
      %v2413 = vand.u32 %v2412, 4294901760
      %2414 = vmatpush.msra.mxu0 %v2413
      %v2415 = vand.u32 %v1820, 4294901760
      %2416 = vmatmul.f32.gmra.mxu0 %v2415
      %v2417 = vpop.f32.mrf.mxu0
      %v2418 = vadd.f32 %v2283, %v2417
      %v2419 = vand.u32 %v1823, 4294901760
      %2420 = vmatmul.f32.gmra.mxu0 %v2419
      %v2421 = vpop.f32.mrf.mxu0
      %v2422 = vadd.f32 %v2289, %v2421
      %v2423 = vand.u32 %v1826, 4294901760
      %2424 = vmatmul.f32.gmra.mxu0 %v2423
      %v2425 = vpop.f32.mrf.mxu0
      %v2426 = vadd.f32 %v2295, %v2425
      %v2427 = vand.u32 %v1829, 4294901760
      %2428 = vmatmul.f32.gmra.mxu0 %v2427
      %v2429 = vpop.f32.mrf.mxu0
      %v2430 = vadd.f32 %v2301, %v2429
      %v2431 = vand.u32 %v1832, 4294901760
      %2432 = vmatmul.f32.gmra.mxu0 %v2431
      %v2433 = vpop.f32.mrf.mxu0
      %v2434 = vadd.f32 %v2307, %v2433
      %v2435 = vand.u32 %v1835, 4294901760
      %2436 = vmatmul.f32.gmra.mxu0 %v2435
      %v2437 = vpop.f32.mrf.mxu0
      %v2438 = vadd.f32 %v2313, %v2437
      %v2439 = vand.u32 %v1838, 4294901760
      %2440 = vmatmul.f32.gmra.mxu0 %v2439
      %v2441 = vpop.f32.mrf.mxu0
      %v2442 = vadd.f32 %v2319, %v2441
      %v2443 = vand.u32 %v1841, 4294901760
      %2444 = vmatmul.f32.gmra.mxu0 %v2443
      %v2445 = vpop.f32.mrf.mxu0
      %v2446 = vadd.f32 %v2325, %v2445
      %v2447 = vand.u32 %v1844, 4294901760
      %2448 = vmatmul.f32.gmra.mxu0 %v2447
      %v2449 = vpop.f32.mrf.mxu0
      %v2450 = vadd.f32 %v2331, %v2449
      %v2451 = vand.u32 %v1847, 4294901760
      %2452 = vmatmul.f32.gmra.mxu0 %v2451
      %v2453 = vpop.f32.mrf.mxu0
      %v2454 = vadd.f32 %v2337, %v2453
      %v2455 = vand.u32 %v1850, 4294901760
      %2456 = vmatmul.f32.gmra.mxu0 %v2455
      %v2457 = vpop.f32.mrf.mxu0
      %v2458 = vadd.f32 %v2343, %v2457
      %v2459 = vand.u32 %v1853, 4294901760
      %2460 = vmatmul.f32.gmra.mxu0 %v2459
      %v2461 = vpop.f32.mrf.mxu0
      %v2462 = vadd.f32 %v2349, %v2461
      %v2463 = vand.u32 %v1856, 4294901760
      %2464 = vmatmul.f32.gmra.mxu0 %v2463
      %v2465 = vpop.f32.mrf.mxu0
      %v2466 = vadd.f32 %v2355, %v2465
      %v2467 = vand.u32 %v1859, 4294901760
      %2468 = vmatmul.f32.gmra.mxu0 %v2467
      %v2469 = vpop.f32.mrf.mxu0
      %v2470 = vadd.f32 %v2361, %v2469
      %v2471 = vand.u32 %v1862, 4294901760
      %2472 = vmatmul.f32.gmra.mxu0 %v2471
      %v2473 = vpop.f32.mrf.mxu0
      %v2474 = vadd.f32 %v2367, %v2473
      %v2475 = vand.u32 %v1865, 4294901760
      %2476 = vmatmul.f32.gmra.mxu0 %v2475
      %v2477 = vpop.f32.mrf.mxu0
      %v2478 = vadd.f32 %v2373, %v2477
      %2479 = vdwg.mxu0
      %2480 = vmatpush.msra.mxu0 0.0
      %2481 = vmatpush.msra.mxu0 0.0
      %2482 = vmatpush.msra.mxu0 0.0
      %2483 = vmatpush.msra.mxu0 0.0
      %2484 = vmatpush.msra.mxu0 0.0
      %2485 = vmatpush.msra.mxu0 0.0
      %2486 = vmatpush.msra.mxu0 0.0
      %2487 = vmatpush.msra.mxu0 0.0
      %v2488 = vand.u32 %v1818, 4294901760
      %2489 = vmatpush.msra.mxu0 %v2488
      %v2490 = vand.u32 %v1817, 4294901760
      %2491 = vmatpush.msra.mxu0 %v2490
      %v2492 = vand.u32 %v1816, 4294901760
      %2493 = vmatpush.msra.mxu0 %v2492
      %v2494 = vand.u32 %v1815, 4294901760
      %2495 = vmatpush.msra.mxu0 %v2494
      %v2496 = vand.u32 %v1814, 4294901760
      %2497 = vmatpush.msra.mxu0 %v2496
      %v2498 = vand.u32 %v1813, 4294901760
      %2499 = vmatpush.msra.mxu0 %v2498
      %v2500 = vand.u32 %v1812, 4294901760
      %2501 = vmatpush.msra.mxu0 %v2500
      %v2502 = vand.u32 %v1811, 4294901760
      %2503 = vmatpush.msra.mxu0 %v2502
      %v2504 = vand.u32 %v1820, 4294901760
      %2505 = vmatmul.f32.gmra.mxu0 %v2504
      %v2506 = vpop.f32.mrf.mxu0
      %v2507 = vadd.f32 %v2418, %v2506
      %v2508 = vand.u32 %v1823, 4294901760
      %2509 = vmatmul.f32.gmra.mxu0 %v2508
      %v2510 = vpop.f32.mrf.mxu0
      %v2511 = vadd.f32 %v2422, %v2510
      %v2512 = vand.u32 %v1826, 4294901760
      %2513 = vmatmul.f32.gmra.mxu0 %v2512
      %v2514 = vpop.f32.mrf.mxu0
      %v2515 = vadd.f32 %v2426, %v2514
      %v2516 = vand.u32 %v1829, 4294901760
      %2517 = vmatmul.f32.gmra.mxu0 %v2516
      %v2518 = vpop.f32.mrf.mxu0
      %v2519 = vadd.f32 %v2430, %v2518
      %v2520 = vand.u32 %v1832, 4294901760
      %2521 = vmatmul.f32.gmra.mxu0 %v2520
      %v2522 = vpop.f32.mrf.mxu0
      %v2523 = vadd.f32 %v2434, %v2522
      %v2524 = vand.u32 %v1835, 4294901760
      %2525 = vmatmul.f32.gmra.mxu0 %v2524
      %v2526 = vpop.f32.mrf.mxu0
      %v2527 = vadd.f32 %v2438, %v2526
      %v2528 = vand.u32 %v1838, 4294901760
      %2529 = vmatmul.f32.gmra.mxu0 %v2528
      %v2530 = vpop.f32.mrf.mxu0
      %v2531 = vadd.f32 %v2442, %v2530
      %v2532 = vand.u32 %v1841, 4294901760
      %2533 = vmatmul.f32.gmra.mxu0 %v2532
      %v2534 = vpop.f32.mrf.mxu0
      %v2535 = vadd.f32 %v2446, %v2534
      %v2536 = vand.u32 %v1844, 4294901760
      %2537 = vmatmul.f32.gmra.mxu0 %v2536
      %v2538 = vpop.f32.mrf.mxu0
      %v2539 = vadd.f32 %v2450, %v2538
      %v2540 = vand.u32 %v1847, 4294901760
      %2541 = vmatmul.f32.gmra.mxu0 %v2540
      %v2542 = vpop.f32.mrf.mxu0
      %v2543 = vadd.f32 %v2454, %v2542
      %v2544 = vand.u32 %v1850, 4294901760
      %2545 = vmatmul.f32.gmra.mxu0 %v2544
      %v2546 = vpop.f32.mrf.mxu0
      %v2547 = vadd.f32 %v2458, %v2546
      %v2548 = vand.u32 %v1853, 4294901760
      %2549 = vmatmul.f32.gmra.mxu0 %v2548
      %v2550 = vpop.f32.mrf.mxu0
      %v2551 = vadd.f32 %v2462, %v2550
      %v2552 = vand.u32 %v1856, 4294901760
      %2553 = vmatmul.f32.gmra.mxu0 %v2552
      %v2554 = vpop.f32.mrf.mxu0
      %v2555 = vadd.f32 %v2466, %v2554
      %v2556 = vand.u32 %v1859, 4294901760
      %2557 = vmatmul.f32.gmra.mxu0 %v2556
      %v2558 = vpop.f32.mrf.mxu0
      %v2559 = vadd.f32 %v2470, %v2558
      %v2560 = vand.u32 %v1862, 4294901760
      %2561 = vmatmul.f32.gmra.mxu0 %v2560
      %v2562 = vpop.f32.mrf.mxu0
      %v2563 = vadd.f32 %v2474, %v2562
      %v2564 = vand.u32 %v1865, 4294901760
      %2565 = vmatmul.f32.gmra.mxu0 %v2564
      %v2566 = vpop.f32.mrf.mxu0
      %v2567 = vadd.f32 %v2478, %v2566
      %2568 = vdwg.mxu0
      %v2569 = vround.ne.pseudo %v2507
      %v2570 = vround.ne.pseudo %v2511
      %v2571 = vround.ne.pseudo %v2515
      %v2572 = vround.ne.pseudo %v2519
      %v2573 = vround.ne.pseudo %v2523
      %v2574 = vround.ne.pseudo %v2527
      %v2575 = vround.ne.pseudo %v2531
      %v2576 = vround.ne.pseudo %v2535
      %v2577 = vround.ne.pseudo %v2539
      %v2578 = vround.ne.pseudo %v2543
      %v2579 = vround.ne.pseudo %v2547
      %v2580 = vround.ne.pseudo %v2551
      %v2581 = vround.ne.pseudo %v2555
      %v2582 = vround.ne.pseudo %v2559
      %v2583 = vround.ne.pseudo %v2563
      %v2584 = vround.ne.pseudo %v2567
      %v2585 = vmax.f32 %v2569, -2048.0
      %v2586 = vmax.f32 %v2570, -2048.0
      %v2587 = vmax.f32 %v2571, -2048.0
      %v2588 = vmax.f32 %v2572, -2048.0
      %v2589 = vmax.f32 %v2573, -2048.0
      %v2590 = vmax.f32 %v2574, -2048.0
      %v2591 = vmax.f32 %v2575, -2048.0
      %v2592 = vmax.f32 %v2576, -2048.0
      %v2593 = vmax.f32 %v2577, -2048.0
      %v2594 = vmax.f32 %v2578, -2048.0
      %v2595 = vmax.f32 %v2579, -2048.0
      %v2596 = vmax.f32 %v2580, -2048.0
      %v2597 = vmax.f32 %v2581, -2048.0
      %v2598 = vmax.f32 %v2582, -2048.0
      %v2599 = vmax.f32 %v2583, -2048.0
      %v2600 = vmax.f32 %v2584, -2048.0
      %v2601 = vmin.f32 %v2585, 2047.0
      %v2602 = vmin.f32 %v2586, 2047.0
      %v2603 = vmin.f32 %v2587, 2047.0
      %v2604 = vmin.f32 %v2588, 2047.0
      %v2605 = vmin.f32 %v2589, 2047.0
      %v2606 = vmin.f32 %v2590, 2047.0
      %v2607 = vmin.f32 %v2591, 2047.0
      %v2608 = vmin.f32 %v2592, 2047.0
      %v2609 = vmin.f32 %v2593, 2047.0
      %v2610 = vmin.f32 %v2594, 2047.0
      %v2611 = vmin.f32 %v2595, 2047.0
      %v2612 = vmin.f32 %v2596, 2047.0
      %v2613 = vmin.f32 %v2597, 2047.0
      %v2614 = vmin.f32 %v2598, 2047.0
      %v2615 = vmin.f32 %v2599, 2047.0
      %v2616 = vmin.f32 %v2600, 2047.0
      %v2617 = vmul.f32 %v2601, 0.00390625
      %v2618 = vmul.f32 %v2602, 0.00390625
      %v2619 = vmul.f32 %v2603, 0.00390625
      %v2620 = vmul.f32 %v2604, 0.00390625
      %v2621 = vmul.f32 %v2605, 0.00390625
      %v2622 = vmul.f32 %v2606, 0.00390625
      %v2623 = vmul.f32 %v2607, 0.00390625
      %v2624 = vmul.f32 %v2608, 0.00390625
      %v2625 = vmul.f32 %v2609, 0.00390625
      %v2626 = vmul.f32 %v2610, 0.00390625
      %v2627 = vmul.f32 %v2611, 0.00390625
      %v2628 = vmul.f32 %v2612, 0.00390625
      %v2629 = vmul.f32 %v2613, 0.00390625
      %v2630 = vmul.f32 %v2614, 0.00390625
      %v2631 = vmul.f32 %v2615, 0.00390625
      %v2632 = vmul.f32 %v2616, 0.00390625
      %vm2633 = vcmask 31744
      %2634 = vst.msk [vmem:[%s199] sm:$0xff] %vm2633, %v2617
      %2635 = vst.msk [vmem:[%s199 + $0x8] sm:$0xff] %vm2633, %v2618
      %2636 = vst.msk [vmem:[%s199 + $0x10] sm:$0xff] %vm2633, %v2619
      %2637 = vst.msk [vmem:[%s199 + $0x18] sm:$0xff] %vm2633, %v2620
      %2638 = vst.msk [vmem:[%s199 + $0x20] sm:$0xff] %vm2633, %v2621
      %2639 = vst.msk [vmem:[%s199 + $0x28] sm:$0xff] %vm2633, %v2622
      %2640 = vst.msk [vmem:[%s199 + $0x30] sm:$0xff] %vm2633, %v2623
      %2641 = vst.msk [vmem:[%s199 + $0x38] sm:$0xff] %vm2633, %v2624
      %2642 = vst.msk [vmem:[%s199 + $0x40] sm:$0xff] %vm2633, %v2625
      %2643 = vst.msk [vmem:[%s199 + $0x48] sm:$0xff] %vm2633, %v2626
      %2644 = vst.msk [vmem:[%s199 + $0x50] sm:$0xff] %vm2633, %v2627
      %2645 = vst.msk [vmem:[%s199 + $0x58] sm:$0xff] %vm2633, %v2628
      %2646 = vst.msk [vmem:[%s199 + $0x60] sm:$0xff] %vm2633, %v2629
      %2647 = vst.msk [vmem:[%s199 + $0x68] sm:$0xff] %vm2633, %v2630
      %2648 = vst.msk [vmem:[%s199 + $0x70] sm:$0xff] %vm2633, %v2631
      %2649 = vst.msk [vmem:[%s199 + $0x78] sm:$0xff] %vm2633, %v2632
      %s2650 = smul.u32 16, %s15
      %p2651 = scmp.lt.s32.totalorder %s2650, 31
      %s2652 = scalar_select %p2651, %s2650, 31
      %s2653 = smul.addr %s2652, 8
      %s2654 = scalar_lea.vmem %s4, %s2653
      // Predicated region
      $region37: #{tpu_custom_call.1} parent=35 // pred_check
        %p2655 = pneg %p122
      $region38: #{tpu_custom_call.1} parent=35 // pred_check_branch
        %2657 = sbr.rel (%p2655) target = $region40
      $region39: #{tpu_custom_call.1} parent=35 // pred_region
        %s2658 = smul.u32 16, %s15
      $region40: #{tpu_custom_call.1} parent=35 // pred_fallthru
        _
    $region36: #{tpu_custom_call.1} parent=5 // pred_fallthru
      _
    %p2659 = scmp.le.s32.totalorder 2, %s10
    // Predicated region
    $region41: #{tpu_custom_call.1} parent=5 // pred_check
      %p2660 = pneg %p2659
    $region42: #{tpu_custom_call.1} parent=5 // pred_check_branch
      %2662 = sbr.rel (%p2660) target = $region44
    $region43: #{tpu_custom_call.1} parent=5 // pred_region
      %s2663 = ssub.s32 %s10, 2
      // Predicated region
      $region45: #{tpu_custom_call.1} parent=43 // pred_check
        %p2664 = pneg %p128
      $region46: #{tpu_custom_call.1} parent=43 // pred_check_branch
        %2666 = sbr.rel (%p2664) target = $region48
      $region47: #{tpu_custom_call.1} parent=43 // pred_region
        %s2667 = smul.u32 16, %s16
        %p2668 = scmp.lt.s32.totalorder %s2667, 31
        %s2669 = scalar_select %p2668, %s2667, 31
        %s2670 = smul.addr %s2669, 8
        %s2671 = scalar_lea.vmem %s4, %s2670
      $region48: #{tpu_custom_call.1} parent=43 // pred_fallthru
        _
    $region44: #{tpu_custom_call.1} parent=5 // pred_fallthru
      _
  $region6: #{tpu_custom_call.1} parent=0 // loop_footer
    %s14 = sadd.s32 1, %s10
  $region7: #{tpu_custom_call.1} parent=0 // loop_footer_branch
    %9 = sbr.rel target = $region3
  $region8: #{tpu_custom_call.1} parent=0 // loop_exit
    _

</llo_original>
